<compile_context>
chip_gen: v7x
topology: tpu7x:2x2x1
jax: 0.10.0
libtpu: 0.0.40
codegen_flags: <defaults>
</compile_context>

<pallas_src>
import math
import functools

import jax
import jax.numpy as jnp
from jax import lax
from jax.experimental import pallas as pl
from jax.experimental.pallas import tpu as pltpu


def _gelu_exact(x):
    # nn.GELU() default = exact erf-based GELU (kept exact to match PyTorch;
    # tanh-approx would hit the EUP but changes numerics).
    return 0.5 * x * (1.0 + lax.erf(x * (1.0 / math.sqrt(2.0))))


def _layernorm(x, w, b, eps=1e-5):
    mu = jnp.mean(x, axis=-1, keepdims=True)
    var = jnp.mean((x - mu) ** 2, axis=-1, keepdims=True)
    return (x - mu) * lax.rsqrt(var + eps) * w + b


def encoder_layer_kernel(x_full_ref, x_tile_ref,
                         ln1_w_ref, ln1_b_ref, ln2_w_ref, ln2_b_ref,
                         wq_ref, bq_ref, wk_ref, bk_ref, wv_ref, bv_ref,
                         wo_ref, bo_ref,
                         w1_ref, b1_ref, w2_ref, b2_ref,
                         o_ref,
                         k_sc, v_sc,
                         *, num_heads, tq):
    S = x_full_ref.shape[1]
    D = x_full_ref.shape[2]
    H = num_heads
    dh = D // H
    scale = 1.0 / math.sqrt(dh)
    qi = pl.program_id(1)

    ln1_w = ln1_w_ref[0]
    ln1_b = ln1_b_ref[0]

    # ---- K/V for the full sequence: computed once per batch element (q tile 0),
    #      stored head-major in bf16 VMEM scratch, reused by every query tile. ----
    @pl.when(qi == 0)
    def _():
        xn_full = _layernorm(x_full_ref[0], ln1_w, ln1_b).astype(jnp.bfloat16)
        k = jnp.dot(xn_full, wk_ref[...], preferred_element_type=jnp.float32) + bk_ref[0]
        v = jnp.dot(xn_full, wv_ref[...], preferred_element_type=jnp.float32) + bv_ref[0]
        k_sc[...] = k.reshape(S, H, dh).transpose(1, 0, 2).astype(jnp.bfloat16)
        v_sc[...] = v.reshape(S, H, dh).transpose(1, 0, 2).astype(jnp.bfloat16)

    # ---- Query tile: LN1 -> Q projection -> head-batched attention ----
    x_tile = x_tile_ref[0]                                    # (tq, D) f32
    xn1 = _layernorm(x_tile, ln1_w, ln1_b)
    q = jnp.dot(xn1.astype(jnp.bfloat16), wq_ref[...],
                preferred_element_type=jnp.float32) + bq_ref[0]
    q3 = q.reshape(tq, H, dh).transpose(1, 0, 2).astype(jnp.bfloat16)    # (H, tq, dh)

    s = jnp.einsum("hqd,hkd->hqk", q3, k_sc[...],
                   preferred_element_type=jnp.float32) * scale           # (H, tq, S)
    s = s - jnp.max(s, axis=-1, keepdims=True)
    p = jnp.exp(s)
    p = p * pl.reciprocal(jnp.sum(p, axis=-1, keepdims=True), approx=True)
    a = jnp.einsum("hqk,hkd->hqd", p.astype(jnp.bfloat16), v_sc[...],
                   preferred_element_type=jnp.float32)                   # (H, tq, dh)
    attn = a.transpose(1, 0, 2).reshape(tq, D)
    attn = jnp.dot(attn.astype(jnp.bfloat16), wo_ref[...],
                   preferred_element_type=jnp.float32) + bo_ref[0]
    x1 = x_tile + attn

    # ---- LN2 -> MLP (Linear -> GELU -> Linear) -> residual ----
    # TODO(synk): dropout_1 / dropout_2 are identity in eval mode, so omitted.
    xn2 = _layernorm(x1, ln2_w_ref[0], ln2_b_ref[0])
    h1 = jnp.dot(xn2.astype(jnp.bfloat16), w1_ref[...],
                 preferred_element_type=jnp.float32) + b1_ref[0]
    h1 = _gelu_exact(h1)
    h2 = jnp.dot(h1.astype(jnp.bfloat16), w2_ref[...],
                 preferred_element_type=jnp.float32) + b2_ref[0]
    o_ref[0] = (x1 + h2).astype(o_ref.dtype)


def _pick_query_tile(S):
    for cand in (256, 128, 64, 32, 16, 8):
        if S % cand == 0:
            return cand
    return S   # ragged / tiny S: single tile (block == full dim is allowed)


def encoder_layer_pallas(x, params, num_heads):
    B, S, D = x.shape
    M = params["w1"].shape[1]
    assert D % num_heads == 0, "hidden_dim must be divisible by num_heads"
    dh = D // num_heads
    tq = _pick_query_tile(S)
    n_q = S // tq

    # matmul weights in bf16 (native MXU input; halves weight DMA/VMEM);
    # biases / LayerNorm params stay f32 (elementwise path stays f32).
    bf = lambda name: params[name].astype(jnp.bfloat16)
    f32_row = lambda name, n: params[name].reshape(1, n).astype(jnp.float32)

    weight_args = [
        f32_row("ln1_w", D), f32_row("ln1_b", D),
        f32_row("ln2_w", D), f32_row("ln2_b", D),
        bf("wq"), f32_row("bq", D), bf("wk"), f32_row("bk", D),
        bf("wv"), f32_row("bv", D), bf("wo"), f32_row("bo", D),
        bf("w1"), f32_row("b1", M), bf("w2"), f32_row("b2", D),
    ]
    # whole-array, single-buffered VMEM residency for the grid-constant weights
    weight_spec = pl.BlockSpec(memory_space=pltpu.MemorySpace.VMEM)

    in_specs = ([pl.BlockSpec((1, S, D), lambda b, q: (b, 0, 0)),     # full seq (K/V path)
                 pl.BlockSpec((1, tq, D), lambda b, q: (b, q, 0))]    # query tile
                + [weight_spec] * len(weight_args))

    # explicit scoped-VMEM budget sized from the footprint (capped for v7x's 64 MiB)
    est = ((4 * D * D + 2 * D * M) * 2                       # bf16 weight matrices
           + (8 * D + M) * 4                                 # f32 biases / LN params
           + 2 * S * D * 4 + 4 * tq * D * 4                  # x_full / x_tile / out buffers
           + 2 * S * D * 2                                   # K/V scratch (bf16)
           + (tq * M + num_heads * tq * S + 6 * tq * D + 2 * S * D) * 4)  # intermediates
    vmem_limit = int(min(64 * 2**20, max(32 * 2**20, 2 * est)))

    kernel = functools.partial(encoder_layer_kernel, num_heads=num_heads, tq=tq)
    return pl.pallas_call(
        kernel,
        out_shape=jax.ShapeDtypeStruct((B, S, D), x.dtype),
        grid=(B, n_q),
        in_specs=in_specs,
        out_specs=pl.BlockSpec((1, tq, D), lambda b, q: (b, q, 0)),
        scratch_shapes=[pltpu.VMEM((num_heads, S, dh), jnp.bfloat16),   # K (head-major)
                        pltpu.VMEM((num_heads, S, dh), jnp.bfloat16)],  # V (head-major)
        compiler_params=pltpu.CompilerParams(
            dimension_semantics=("parallel", "arbitrary"),
            vmem_limit_bytes=vmem_limit),
    )(x, x, *weight_args)


def encoder_layer_ref(x, params, num_heads):
    """Pure-JAX f32 reference for correctness checking."""
    B, S, D = x.shape
    dh = D // num_heads

    def ln(v, w, b):
        mu = jnp.mean(v, -1, keepdims=True)
        var = jnp.mean((v - mu) ** 2, -1, keepdims=True)
        return (v - mu) / jnp.sqrt(var + 1e-5) * w + b

    xn = ln(x, params["ln1_w"], params["ln1_b"])
    q = xn @ params["wq"] + params["bq"]
    k = xn @ params["wk"] + params["bk"]
    v = xn @ params["wv"] + params["bv"]
    q = q.reshape(B, S, num_heads, dh).transpose(0, 2, 1, 3)
    k = k.reshape(B, S, num_heads, dh).transpose(0, 2, 1, 3)
    v = v.reshape(B, S, num_heads, dh).transpose(0, 2, 1, 3)
    s = jnp.einsum("bhqd,bhkd->bhqk", q, k) / math.sqrt(dh)
    p = jax.nn.softmax(s, axis=-1)
    a = jnp.einsum("bhqk,bhkd->bhqd", p, v).transpose(0, 2, 1, 3).reshape(B, S, D)
    a = a @ params["wo"] + params["bo"]
    x1 = x + a
    xn2 = ln(x1, params["ln2_w"], params["ln2_b"])
    h = xn2 @ params["w1"] + params["b1"]
    h = 0.5 * h * (1.0 + lax.erf(h / math.sqrt(2.0)))
    h = h @ params["w2"] + params["b2"]
    return x1 + h


def init_params(key, hidden_dim, mlp_dim):
    ks = jax.random.split(key, 8)
    s = 0.02
    return {
        "ln1_w": jnp.ones((hidden_dim,), jnp.float32),
        "ln1_b": jnp.zeros((hidden_dim,), jnp.float32),
        "ln2_w": jnp.ones((hidden_dim,), jnp.float32),
        "ln2_b": jnp.zeros((hidden_dim,), jnp.float32),
        "wq": s * jax.random.normal(ks[0], (hidden_dim, hidden_dim), jnp.float32),
        "bq": jnp.zeros((hidden_dim,), jnp.float32),
        "wk": s * jax.random.normal(ks[1], (hidden_dim, hidden_dim), jnp.float32),
        "bk": jnp.zeros((hidden_dim,), jnp.float32),
        "wv": s * jax.random.normal(ks[2], (hidden_dim, hidden_dim), jnp.float32),
        "bv": jnp.zeros((hidden_dim,), jnp.float32),
        "wo": s * jax.random.normal(ks[3], (hidden_dim, hidden_dim), jnp.float32),
        "bo": jnp.zeros((hidden_dim,), jnp.float32),
        "w1": s * jax.random.normal(ks[4], (hidden_dim, mlp_dim), jnp.float32),
        "b1": 0.1 * jax.random.normal(ks[5], (mlp_dim,), jnp.float32),
        "w2": s * jax.random.normal(ks[6], (mlp_dim, hidden_dim), jnp.float32),
        "b2": 0.1 * jax.random.normal(ks[7], (hidden_dim,), jnp.float32),
    }


if __name__ == "__main__":
    B, S, D, M, H = 2, 8, 32, 64, 4
    key = jax.random.PRNGKey(0)
    kx, kp = jax.random.split(key)
    x = jax.random.normal(kx, (B, S, D), jnp.float32)
    params = init_params(kp, D, M)

    out = encoder_layer_pallas(x, params, num_heads=H)
    out = jax.block_until_ready(out)

    ref = encoder_layer_ref(x, params, num_heads=H)
    assert out.shape == (B, S, D)
    max_err = float(jnp.max(jnp.abs(out - ref)))
    # bf16 MXU operands + approx reciprocal -> relaxed (but still tight) tolerance
    assert jnp.allclose(out, ref, rtol=2e-2, atol=2e-2), (
        f"mismatch vs JAX reference (max abs err {max_err})")
    print("KERNEL_OK")
</pallas_src>

<mosaic_0001>
module attributes {stable_mosaic.version = 11 : i64} {
  func.func @encoder_layer_kernel(%arg0: i32, %arg1: i32, %arg2: memref<1x8x32xf32, #tpu.memory_space<vmem>>, %arg3: memref<1x8x32xf32, #tpu.memory_space<vmem>>, %arg4: memref<1x32xf32, #tpu.memory_space<vmem>>, %arg5: memref<1x32xf32, #tpu.memory_space<vmem>>, %arg6: memref<1x32xf32, #tpu.memory_space<vmem>>, %arg7: memref<1x32xf32, #tpu.memory_space<vmem>>, %arg8: memref<32x32xbf16, #tpu.memory_space<vmem>>, %arg9: memref<1x32xf32, #tpu.memory_space<vmem>>, %arg10: memref<32x32xbf16, #tpu.memory_space<vmem>>, %arg11: memref<1x32xf32, #tpu.memory_space<vmem>>, %arg12: memref<32x32xbf16, #tpu.memory_space<vmem>>, %arg13: memref<1x32xf32, #tpu.memory_space<vmem>>, %arg14: memref<32x32xbf16, #tpu.memory_space<vmem>>, %arg15: memref<1x32xf32, #tpu.memory_space<vmem>>, %arg16: memref<32x64xbf16, #tpu.memory_space<vmem>>, %arg17: memref<1x64xf32, #tpu.memory_space<vmem>>, %arg18: memref<64x32xbf16, #tpu.memory_space<vmem>>, %arg19: memref<1x32xf32, #tpu.memory_space<vmem>>, %arg20: memref<1x8x32xf32, #tpu.memory_space<vmem>>, %arg21: memref<4x8x8xbf16, #tpu.memory_space<vmem>>, %arg22: memref<4x8x8xbf16, #tpu.memory_space<vmem>>) attributes {dimension_semantics = [#tpu.dimension_semantics<parallel>, #tpu.dimension_semantics<arbitrary>], iteration_bounds = array<i64: 2, 1>, scalar_prefetch = 0 : i64, scratch_operands = 2 : i64, tpu.core_type = #tpu.core_type<tc>, window_params = [{transform_indices = @transform_0, window_bounds = array<i64: 1, 8, 32>}, {transform_indices = @transform_1, window_bounds = array<i64: 1, 8, 32>}, {pipeline_mode = #tpu.pipeline_mode<synchronous>, transform_indices = @transform_2, window_bounds = array<i64: 1, 32>}, {pipeline_mode = #tpu.pipeline_mode<synchronous>, transform_indices = @transform_3, window_bounds = array<i64: 1, 32>}, {pipeline_mode = #tpu.pipeline_mode<synchronous>, transform_indices = @transform_4, window_bounds = array<i64: 1, 32>}, {pipeline_mode = #tpu.pipeline_mode<synchronous>, transform_indices = @transform_5, window_bounds = array<i64: 1, 32>}, {pipeline_mode = #tpu.pipeline_mode<synchronous>, transform_indices = @transform_6, window_bounds = array<i64: 32, 32>}, {pipeline_mode = #tpu.pipeline_mode<synchronous>, transform_indices = @transform_7, window_bounds = array<i64: 1, 32>}, {pipeline_mode = #tpu.pipeline_mode<synchronous>, transform_indices = @transform_8, window_bounds = array<i64: 32, 32>}, {pipeline_mode = #tpu.pipeline_mode<synchronous>, transform_indices = @transform_9, window_bounds = array<i64: 1, 32>}, {pipeline_mode = #tpu.pipeline_mode<synchronous>, transform_indices = @transform_10, window_bounds = array<i64: 32, 32>}, {pipeline_mode = #tpu.pipeline_mode<synchronous>, transform_indices = @transform_11, window_bounds = array<i64: 1, 32>}, {pipeline_mode = #tpu.pipeline_mode<synchronous>, transform_indices = @transform_12, window_bounds = array<i64: 32, 32>}, {pipeline_mode = #tpu.pipeline_mode<synchronous>, transform_indices = @transform_13, window_bounds = array<i64: 1, 32>}, {pipeline_mode = #tpu.pipeline_mode<synchronous>, transform_indices = @transform_14, window_bounds = array<i64: 32, 64>}, {pipeline_mode = #tpu.pipeline_mode<synchronous>, transform_indices = @transform_15, window_bounds = array<i64: 1, 64>}, {pipeline_mode = #tpu.pipeline_mode<synchronous>, transform_indices = @transform_16, window_bounds = array<i64: 64, 32>}, {pipeline_mode = #tpu.pipeline_mode<synchronous>, transform_indices = @transform_17, window_bounds = array<i64: 1, 32>}, {transform_indices = @transform_18, window_bounds = array<i64: 1, 8, 32>}]} {
    %c0 = arith.constant 0 : index
    %c0_0 = arith.constant 0 : index
    %0 = vector.load %arg4[%c0, %c0_0] : memref<1x32xf32, #tpu.memory_space<vmem>>, vector<1x32xf32>
    %1 = vector.shape_cast %0 : vector<1x32xf32> to vector<32xf32>
    %c0_1 = arith.constant 0 : index
    %c0_2 = arith.constant 0 : index
    %2 = vector.load %arg5[%c0_1, %c0_2] : memref<1x32xf32, #tpu.memory_space<vmem>>, vector<1x32xf32>
    %3 = vector.shape_cast %2 : vector<1x32xf32> to vector<32xf32>
    %c0_i32 = arith.constant 0 : i32
    %4 = arith.cmpi eq, %arg1, %c0_i32 : i32
    %5 = arith.extui %4 : i1 to i32
    %c0_i32_3 = arith.constant 0 : i32
    %6 = arith.cmpi ne, %5, %c0_i32_3 : i32
    scf.if %6 {
      %c0_57 = arith.constant 0 : index
      %c0_58 = arith.constant 0 : index
      %c0_59 = arith.constant 0 : index
      %128 = vector.load %arg2[%c0_57, %c0_58, %c0_59] : memref<1x8x32xf32, #tpu.memory_space<vmem>>, vector<1x8x32xf32>
      %129 = vector.shape_cast %128 : vector<1x8x32xf32> to vector<8x32xf32>
      %cst_60 = arith.constant dense<0.000000e+00> : vector<8xf32>
      %130 = vector.multi_reduction <add>, %129, %cst_60 [1] : vector<8x32xf32> to vector<8xf32>
      %131 = vector.shape_cast %130 : vector<8xf32> to vector<8x1xf32>
      %cst_61 = arith.constant 3.200000e+01 : f32
      %132 = vector.broadcast %cst_61 : f32 to vector<8x1xf32>
      %133 = arith.divf %131, %132 : vector<8x1xf32>
      %134 = vector.broadcast %133 : vector<8x1xf32> to vector<8x32xf32>
      %135 = arith.subf %129, %134 : vector<8x32xf32>
      %136 = arith.mulf %135, %135 : vector<8x32xf32>
      %cst_62 = arith.constant dense<0.000000e+00> : vector<8xf32>
      %137 = vector.multi_reduction <add>, %136, %cst_62 [1] : vector<8x32xf32> to vector<8xf32>
      %138 = vector.shape_cast %137 : vector<8xf32> to vector<8x1xf32>
      %cst_63 = arith.constant 3.200000e+01 : f32
      %139 = vector.broadcast %cst_63 : f32 to vector<8x1xf32>
      %140 = arith.divf %138, %139 : vector<8x1xf32>
      %141 = vector.broadcast %133 : vector<8x1xf32> to vector<8x32xf32>
      %142 = arith.subf %129, %141 : vector<8x32xf32>
      %cst_64 = arith.constant 9.99999974E-6 : f32
      %143 = vector.broadcast %cst_64 : f32 to vector<8x1xf32>
      %144 = arith.addf %140, %143 : vector<8x1xf32>
      %145 = math.rsqrt %144 : vector<8x1xf32>
      %146 = vector.broadcast %145 : vector<8x1xf32> to vector<8x32xf32>
      %147 = arith.mulf %142, %146 : vector<8x32xf32>
      %148 = vector.shape_cast %1 : vector<32xf32> to vector<1x32xf32>
      %149 = vector.broadcast %148 : vector<1x32xf32> to vector<8x32xf32>
      %150 = arith.mulf %147, %149 : vector<8x32xf32>
      %151 = vector.shape_cast %3 : vector<32xf32> to vector<1x32xf32>
      %152 = vector.broadcast %151 : vector<1x32xf32> to vector<8x32xf32>
      %153 = arith.addf %150, %152 : vector<8x32xf32>
      %154 = arith.truncf %153 : vector<8x32xf32> to vector<8x32xbf16>
      %c0_65 = arith.constant 0 : index
      %c0_66 = arith.constant 0 : index
      %155 = vector.load %arg10[%c0_65, %c0_66] : memref<32x32xbf16, #tpu.memory_space<vmem>>, vector<32x32xbf16>
      %cst_67 = arith.constant dense<0.000000e+00> : vector<8x32xf32>
      %156 = tpu.matmul %154, %155, %cst_67 {dimension_numbers = #tpu.dot_dimension_numbers<[1], [0], [0], [1], [0, 0, 1, 1], [], []>} : vector<8x32xbf16>, vector<32x32xbf16>, vector<8x32xf32> -> vector<8x32xf32>
      %c0_68 = arith.constant 0 : index
      %c0_69 = arith.constant 0 : index
      %157 = vector.load %arg11[%c0_68, %c0_69] : memref<1x32xf32, #tpu.memory_space<vmem>>, vector<1x32xf32>
      %158 = vector.shape_cast %157 : vector<1x32xf32> to vector<32xf32>
      %159 = vector.shape_cast %158 : vector<32xf32> to vector<1x32xf32>
      %160 = vector.broadcast %159 : vector<1x32xf32> to vector<8x32xf32>
      %161 = arith.addf %156, %160 : vector<8x32xf32>
      %c0_70 = arith.constant 0 : index
      %c0_71 = arith.constant 0 : index
      %162 = vector.load %arg12[%c0_70, %c0_71] : memref<32x32xbf16, #tpu.memory_space<vmem>>, vector<32x32xbf16>
      %cst_72 = arith.constant dense<0.000000e+00> : vector<8x32xf32>
      %163 = tpu.matmul %154, %162, %cst_72 {dimension_numbers = #tpu.dot_dimension_numbers<[1], [0], [0], [1], [0, 0, 1, 1], [], []>} : vector<8x32xbf16>, vector<32x32xbf16>, vector<8x32xf32> -> vector<8x32xf32>
      %c0_73 = arith.constant 0 : index
      %c0_74 = arith.constant 0 : index
      %164 = vector.load %arg13[%c0_73, %c0_74] : memref<1x32xf32, #tpu.memory_space<vmem>>, vector<1x32xf32>
      %165 = vector.shape_cast %164 : vector<1x32xf32> to vector<32xf32>
      %166 = vector.shape_cast %165 : vector<32xf32> to vector<1x32xf32>
      %167 = vector.broadcast %166 : vector<1x32xf32> to vector<8x32xf32>
      %168 = arith.addf %163, %167 : vector<8x32xf32>
      %169 = vector.shape_cast %161 : vector<8x32xf32> to vector<8x4x8xf32>
      %170 = tpu.transpose %169, [1, 0, 2] : vector<8x4x8xf32> -> vector<4x8x8xf32>
      %171 = arith.truncf %170 : vector<4x8x8xf32> to vector<4x8x8xbf16>
      %c0_75 = arith.constant 0 : index
      %c0_76 = arith.constant 0 : index
      %c0_77 = arith.constant 0 : index
      %172 = vector.load %arg21[%c0_75, %c0_76, %c0_77] : memref<4x8x8xbf16, #tpu.memory_space<vmem>>, vector<4x8x8xbf16>
      tpu.vector_store %arg21[%c0_75, %c0_76, %c0_77], %171 {strides = array<i32>} : memref<4x8x8xbf16, #tpu.memory_space<vmem>>, vector<4x8x8xbf16>,
      %173 = vector.shape_cast %168 : vector<8x32xf32> to vector<8x4x8xf32>
      %174 = tpu.transpose %173, [1, 0, 2] : vector<8x4x8xf32> -> vector<4x8x8xf32>
      %175 = arith.truncf %174 : vector<4x8x8xf32> to vector<4x8x8xbf16>
      %c0_78 = arith.constant 0 : index
      %c0_79 = arith.constant 0 : index
      %c0_80 = arith.constant 0 : index
      %176 = vector.load %arg22[%c0_78, %c0_79, %c0_80] : memref<4x8x8xbf16, #tpu.memory_space<vmem>>, vector<4x8x8xbf16>
      tpu.vector_store %arg22[%c0_78, %c0_79, %c0_80], %175 {strides = array<i32>} : memref<4x8x8xbf16, #tpu.memory_space<vmem>>, vector<4x8x8xbf16>,
    } else {
    }
    %c0_4 = arith.constant 0 : index
    %c0_5 = arith.constant 0 : index
    %c0_6 = arith.constant 0 : index
    %7 = vector.load %arg3[%c0_4, %c0_5, %c0_6] : memref<1x8x32xf32, #tpu.memory_space<vmem>>, vector<1x8x32xf32>
    %8 = vector.shape_cast %7 : vector<1x8x32xf32> to vector<8x32xf32>
    %cst = arith.constant dense<0.000000e+00> : vector<8xf32>
    %9 = vector.multi_reduction <add>, %8, %cst [1] : vector<8x32xf32> to vector<8xf32>
    %10 = vector.shape_cast %9 : vector<8xf32> to vector<8x1xf32>
    %cst_7 = arith.constant 3.200000e+01 : f32
    %11 = vector.broadcast %cst_7 : f32 to vector<8x1xf32>
    %12 = arith.divf %10, %11 : vector<8x1xf32>
    %13 = vector.broadcast %12 : vector<8x1xf32> to vector<8x32xf32>
    %14 = arith.subf %8, %13 : vector<8x32xf32>
    %15 = arith.mulf %14, %14 : vector<8x32xf32>
    %cst_8 = arith.constant dense<0.000000e+00> : vector<8xf32>
    %16 = vector.multi_reduction <add>, %15, %cst_8 [1] : vector<8x32xf32> to vector<8xf32>
    %17 = vector.shape_cast %16 : vector<8xf32> to vector<8x1xf32>
    %cst_9 = arith.constant 3.200000e+01 : f32
    %18 = vector.broadcast %cst_9 : f32 to vector<8x1xf32>
    %19 = arith.divf %17, %18 : vector<8x1xf32>
    %20 = vector.broadcast %12 : vector<8x1xf32> to vector<8x32xf32>
    %21 = arith.subf %8, %20 : vector<8x32xf32>
    %cst_10 = arith.constant 9.99999974E-6 : f32
    %22 = vector.broadcast %cst_10 : f32 to vector<8x1xf32>
    %23 = arith.addf %19, %22 : vector<8x1xf32>
    %24 = math.rsqrt %23 : vector<8x1xf32>
    %25 = vector.broadcast %24 : vector<8x1xf32> to vector<8x32xf32>
    %26 = arith.mulf %21, %25 : vector<8x32xf32>
    %27 = vector.shape_cast %1 : vector<32xf32> to vector<1x32xf32>
    %28 = vector.broadcast %27 : vector<1x32xf32> to vector<8x32xf32>
    %29 = arith.mulf %26, %28 : vector<8x32xf32>
    %30 = vector.shape_cast %3 : vector<32xf32> to vector<1x32xf32>
    %31 = vector.broadcast %30 : vector<1x32xf32> to vector<8x32xf32>
    %32 = arith.addf %29, %31 : vector<8x32xf32>
    %33 = arith.truncf %32 : vector<8x32xf32> to vector<8x32xbf16>
    %c0_11 = arith.constant 0 : index
    %c0_12 = arith.constant 0 : index
    %34 = vector.load %arg8[%c0_11, %c0_12] : memref<32x32xbf16, #tpu.memory_space<vmem>>, vector<32x32xbf16>
    %cst_13 = arith.constant dense<0.000000e+00> : vector<8x32xf32>
    %35 = tpu.matmul %33, %34, %cst_13 {dimension_numbers = #tpu.dot_dimension_numbers<[1], [0], [0], [1], [0, 0, 1, 1], [], []>} : vector<8x32xbf16>, vector<32x32xbf16>, vector<8x32xf32> -> vector<8x32xf32>
    %c0_14 = arith.constant 0 : index
    %c0_15 = arith.constant 0 : index
    %36 = vector.load %arg9[%c0_14, %c0_15] : memref<1x32xf32, #tpu.memory_space<vmem>>, vector<1x32xf32>
    %37 = vector.shape_cast %36 : vector<1x32xf32> to vector<32xf32>
    %38 = vector.shape_cast %37 : vector<32xf32> to vector<1x32xf32>
    %39 = vector.broadcast %38 : vector<1x32xf32> to vector<8x32xf32>
    %40 = arith.addf %35, %39 : vector<8x32xf32>
    %41 = vector.shape_cast %40 : vector<8x32xf32> to vector<8x4x8xf32>
    %42 = tpu.transpose %41, [1, 0, 2] : vector<8x4x8xf32> -> vector<4x8x8xf32>
    %43 = arith.truncf %42 : vector<4x8x8xf32> to vector<4x8x8xbf16>
    %c0_16 = arith.constant 0 : index
    %c0_17 = arith.constant 0 : index
    %c0_18 = arith.constant 0 : index
    %44 = vector.load %arg21[%c0_16, %c0_17, %c0_18] : memref<4x8x8xbf16, #tpu.memory_space<vmem>>, vector<4x8x8xbf16>
    "tpu.trace_start"() <{level = 10 : i32, message = "hqd,hkd->hqk"}> : () -> ()
    %cst_19 = arith.constant dense<0.000000e+00> : vector<4x8x8xf32>
    %45 = tpu.matmul %43, %44, %cst_19 {dimension_numbers = #tpu.dot_dimension_numbers<[2], [2], [1], [1], [0, 0, 0, 1, 1, 1], [0], [0]>} : vector<4x8x8xbf16>, vector<4x8x8xbf16>, vector<4x8x8xf32> -> vector<4x8x8xf32>
    "tpu.trace_stop"() : () -> ()
    %cst_20 = arith.constant 0.353553385 : f32
    %46 = vector.broadcast %cst_20 : f32 to vector<4x8x8xf32>
    %47 = arith.mulf %45, %46 : vector<4x8x8xf32>
    %cst_21 = arith.constant dense<0xFF800000> : vector<4x8xf32>
    %48 = vector.multi_reduction <maximumf>, %47, %cst_21 [2] : vector<4x8x8xf32> to vector<4x8xf32>
    %49 = vector.shape_cast %48 : vector<4x8xf32> to vector<4x8x1xf32>
    %50 = vector.broadcast %49 : vector<4x8x1xf32> to vector<4x8x8xf32>
    %51 = arith.subf %47, %50 : vector<4x8x8xf32>
    %52 = math.exp %51 : vector<4x8x8xf32>
    %cst_22 = arith.constant dense<0.000000e+00> : vector<4x8xf32>
    %53 = vector.multi_reduction <add>, %52, %cst_22 [2] : vector<4x8x8xf32> to vector<4x8xf32>
    %54 = vector.shape_cast %53 : vector<4x8xf32> to vector<4x8x1xf32>
    %55 = tpu.reciprocal %54 {approx = true} : vector<4x8x1xf32> -> vector<4x8x1xf32>
    %56 = vector.broadcast %55 : vector<4x8x1xf32> to vector<4x8x8xf32>
    %57 = arith.mulf %52, %56 : vector<4x8x8xf32>
    %58 = arith.truncf %57 : vector<4x8x8xf32> to vector<4x8x8xbf16>
    %c0_23 = arith.constant 0 : index
    %c0_24 = arith.constant 0 : index
    %c0_25 = arith.constant 0 : index
    %59 = vector.load %arg22[%c0_23, %c0_24, %c0_25] : memref<4x8x8xbf16, #tpu.memory_space<vmem>>, vector<4x8x8xbf16>
    "tpu.trace_start"() <{level = 10 : i32, message = "hqk,hkd->hqd"}> : () -> ()
    %cst_26 = arith.constant dense<0.000000e+00> : vector<4x8x8xf32>
    %60 = tpu.matmul %58, %59, %cst_26 {dimension_numbers = #tpu.dot_dimension_numbers<[2], [1], [1], [2], [0, 0, 0, 1, 1, 2], [0], [0]>} : vector<4x8x8xbf16>, vector<4x8x8xbf16>, vector<4x8x8xf32> -> vector<4x8x8xf32>
    "tpu.trace_stop"() : () -> ()
    %61 = tpu.transpose %60, [1, 0, 2] : vector<4x8x8xf32> -> vector<8x4x8xf32>
    %62 = vector.shape_cast %61 : vector<8x4x8xf32> to vector<8x32xf32>
    %63 = arith.truncf %62 : vector<8x32xf32> to vector<8x32xbf16>
    %c0_27 = arith.constant 0 : index
    %c0_28 = arith.constant 0 : index
    %64 = vector.load %arg14[%c0_27, %c0_28] : memref<32x32xbf16, #tpu.memory_space<vmem>>, vector<32x32xbf16>
    %cst_29 = arith.constant dense<0.000000e+00> : vector<8x32xf32>
    %65 = tpu.matmul %63, %64, %cst_29 {dimension_numbers = #tpu.dot_dimension_numbers<[1], [0], [0], [1], [0, 0, 1, 1], [], []>} : vector<8x32xbf16>, vector<32x32xbf16>, vector<8x32xf32> -> vector<8x32xf32>
    %c0_30 = arith.constant 0 : index
    %c0_31 = arith.constant 0 : index
    %66 = vector.load %arg15[%c0_30, %c0_31] : memref<1x32xf32, #tpu.memory_space<vmem>>, vector<1x32xf32>
    %67 = vector.shape_cast %66 : vector<1x32xf32> to vector<32xf32>
    %68 = vector.shape_cast %67 : vector<32xf32> to vector<1x32xf32>
    %69 = vector.broadcast %68 : vector<1x32xf32> to vector<8x32xf32>
    %70 = arith.addf %65, %69 : vector<8x32xf32>
    %71 = arith.addf %8, %70 : vector<8x32xf32>
    %c0_32 = arith.constant 0 : index
    %c0_33 = arith.constant 0 : index
    %72 = vector.load %arg6[%c0_32, %c0_33] : memref<1x32xf32, #tpu.memory_space<vmem>>, vector<1x32xf32>
    %73 = vector.shape_cast %72 : vector<1x32xf32> to vector<32xf32>
    %c0_34 = arith.constant 0 : index
    %c0_35 = arith.constant 0 : index
    %74 = vector.load %arg7[%c0_34, %c0_35] : memref<1x32xf32, #tpu.memory_space<vmem>>, vector<1x32xf32>
    %75 = vector.shape_cast %74 : vector<1x32xf32> to vector<32xf32>
    %cst_36 = arith.constant dense<0.000000e+00> : vector<8xf32>
    %76 = vector.multi_reduction <add>, %71, %cst_36 [1] : vector<8x32xf32> to vector<8xf32>
    %77 = vector.shape_cast %76 : vector<8xf32> to vector<8x1xf32>
    %cst_37 = arith.constant 3.200000e+01 : f32
    %78 = vector.broadcast %cst_37 : f32 to vector<8x1xf32>
    %79 = arith.divf %77, %78 : vector<8x1xf32>
    %80 = vector.broadcast %79 : vector<8x1xf32> to vector<8x32xf32>
    %81 = arith.subf %71, %80 : vector<8x32xf32>
    %82 = arith.mulf %81, %81 : vector<8x32xf32>
    %cst_38 = arith.constant dense<0.000000e+00> : vector<8xf32>
    %83 = vector.multi_reduction <add>, %82, %cst_38 [1] : vector<8x32xf32> to vector<8xf32>
    %84 = vector.shape_cast %83 : vector<8xf32> to vector<8x1xf32>
    %cst_39 = arith.constant 3.200000e+01 : f32
    %85 = vector.broadcast %cst_39 : f32 to vector<8x1xf32>
    %86 = arith.divf %84, %85 : vector<8x1xf32>
    %87 = vector.broadcast %79 : vector<8x1xf32> to vector<8x32xf32>
    %88 = arith.subf %71, %87 : vector<8x32xf32>
    %cst_40 = arith.constant 9.99999974E-6 : f32
    %89 = vector.broadcast %cst_40 : f32 to vector<8x1xf32>
    %90 = arith.addf %86, %89 : vector<8x1xf32>
    %91 = math.rsqrt %90 : vector<8x1xf32>
    %92 = vector.broadcast %91 : vector<8x1xf32> to vector<8x32xf32>
    %93 = arith.mulf %88, %92 : vector<8x32xf32>
    %94 = vector.shape_cast %73 : vector<32xf32> to vector<1x32xf32>
    %95 = vector.broadcast %94 : vector<1x32xf32> to vector<8x32xf32>
    %96 = arith.mulf %93, %95 : vector<8x32xf32>
    %97 = vector.shape_cast %75 : vector<32xf32> to vector<1x32xf32>
    %98 = vector.broadcast %97 : vector<1x32xf32> to vector<8x32xf32>
    %99 = arith.addf %96, %98 : vector<8x32xf32>
    %100 = arith.truncf %99 : vector<8x32xf32> to vector<8x32xbf16>
    %c0_41 = arith.constant 0 : index
    %c0_42 = arith.constant 0 : index
    %101 = vector.load %arg16[%c0_41, %c0_42] : memref<32x64xbf16, #tpu.memory_space<vmem>>, vector<32x64xbf16>
    %cst_43 = arith.constant dense<0.000000e+00> : vector<8x64xf32>
    %102 = tpu.matmul %100, %101, %cst_43 {dimension_numbers = #tpu.dot_dimension_numbers<[1], [0], [0], [1], [0, 0, 1, 1], [], []>} : vector<8x32xbf16>, vector<32x64xbf16>, vector<8x64xf32> -> vector<8x64xf32>
    %c0_44 = arith.constant 0 : index
    %c0_45 = arith.constant 0 : index
    %103 = vector.load %arg17[%c0_44, %c0_45] : memref<1x64xf32, #tpu.memory_space<vmem>>, vector<1x64xf32>
    %104 = vector.shape_cast %103 : vector<1x64xf32> to vector<64xf32>
    %105 = vector.shape_cast %104 : vector<64xf32> to vector<1x64xf32>
    %106 = vector.broadcast %105 : vector<1x64xf32> to vector<8x64xf32>
    %107 = arith.addf %102, %106 : vector<8x64xf32>
    %cst_46 = arith.constant 5.000000e-01 : f32
    %108 = vector.broadcast %cst_46 : f32 to vector<8x64xf32>
    %109 = arith.mulf %108, %107 : vector<8x64xf32>
    %cst_47 = arith.constant 0.707106769 : f32
    %110 = vector.broadcast %cst_47 : f32 to vector<8x64xf32>
    %111 = arith.mulf %107, %110 : vector<8x64xf32>
    %112 = math.erf %111 : vector<8x64xf32>
    %cst_48 = arith.constant 1.000000e+00 : f32
    %113 = vector.broadcast %cst_48 : f32 to vector<8x64xf32>
    %114 = arith.addf %113, %112 : vector<8x64xf32>
    %115 = arith.mulf %109, %114 : vector<8x64xf32>
    %116 = arith.truncf %115 : vector<8x64xf32> to vector<8x64xbf16>
    %c0_49 = arith.constant 0 : index
    %c0_50 = arith.constant 0 : index
    %117 = vector.load %arg18[%c0_49, %c0_50] : memref<64x32xbf16, #tpu.memory_space<vmem>>, vector<64x32xbf16>
    %cst_51 = arith.constant dense<0.000000e+00> : vector<8x32xf32>
    %118 = tpu.matmul %116, %117, %cst_51 {dimension_numbers = #tpu.dot_dimension_numbers<[1], [0], [0], [1], [0, 0, 1, 1], [], []>} : vector<8x64xbf16>, vector<64x32xbf16>, vector<8x32xf32> -> vector<8x32xf32>
    %c0_52 = arith.constant 0 : index
    %c0_53 = arith.constant 0 : index
    %119 = vector.load %arg19[%c0_52, %c0_53] : memref<1x32xf32, #tpu.memory_space<vmem>>, vector<1x32xf32>
    %120 = vector.shape_cast %119 : vector<1x32xf32> to vector<32xf32>
    %121 = vector.shape_cast %120 : vector<32xf32> to vector<1x32xf32>
    %122 = vector.broadcast %121 : vector<1x32xf32> to vector<8x32xf32>
    %123 = arith.addf %118, %122 : vector<8x32xf32>
    %124 = arith.addf %71, %123 : vector<8x32xf32>
    %c0_54 = arith.constant 0 : index
    %c0_55 = arith.constant 0 : index
    %c0_56 = arith.constant 0 : index
    %125 = vector.load %arg20[%c0_54, %c0_55, %c0_56] : memref<1x8x32xf32, #tpu.memory_space<vmem>>, vector<1x8x32xf32>
    %126 = vector.shape_cast %125 : vector<1x8x32xf32> to vector<8x32xf32>
    %127 = vector.shape_cast %124 : vector<8x32xf32> to vector<1x8x32xf32>
    tpu.vector_store %arg20[%c0_54, %c0_55, %c0_56], %127 {strides = array<i32>} : memref<1x8x32xf32, #tpu.memory_space<vmem>>, vector<1x8x32xf32>,
    return
  }
  func.func @transform_0(%arg0: i32, %arg1: i32) -> (i32, i32, i32) {
    %c0_i32 = arith.constant 0 : i32
    %c0_i32_0 = arith.constant 0 : i32
    %c0_i32_1 = arith.constant 0 : i32
    return %arg0, %c0_i32, %c0_i32_0 : i32, i32, i32
  }
  func.func @transform_1(%arg0: i32, %arg1: i32) -> (i32, i32, i32) {
    %c0_i32 = arith.constant 0 : i32
    %c0_i32_0 = arith.constant 0 : i32
    return %arg0, %arg1, %c0_i32 : i32, i32, i32
  }
  func.func @transform_2(%arg0: i32, %arg1: i32) -> (i32, i32) {
    %c0_i32 = arith.constant 0 : i32
    %c0_i32_0 = arith.constant 0 : i32
    %c0_i32_1 = arith.constant 0 : i32
    return %c0_i32, %c0_i32_0 : i32, i32
  }
  func.func @transform_3(%arg0: i32, %arg1: i32) -> (i32, i32) {
    %c0_i32 = arith.constant 0 : i32
    %c0_i32_0 = arith.constant 0 : i32
    %c0_i32_1 = arith.constant 0 : i32
    return %c0_i32, %c0_i32_0 : i32, i32
  }
  func.func @transform_4(%arg0: i32, %arg1: i32) -> (i32, i32) {
    %c0_i32 = arith.constant 0 : i32
    %c0_i32_0 = arith.constant 0 : i32
    %c0_i32_1 = arith.constant 0 : i32
    return %c0_i32, %c0_i32_0 : i32, i32
  }
  func.func @transform_5(%arg0: i32, %arg1: i32) -> (i32, i32) {
    %c0_i32 = arith.constant 0 : i32
    %c0_i32_0 = arith.constant 0 : i32
    %c0_i32_1 = arith.constant 0 : i32
    return %c0_i32, %c0_i32_0 : i32, i32
  }
  func.func @transform_6(%arg0: i32, %arg1: i32) -> (i32, i32) {
    %c0_i32 = arith.constant 0 : i32
    %c0_i32_0 = arith.constant 0 : i32
    %c0_i32_1 = arith.constant 0 : i32
    return %c0_i32, %c0_i32_0 : i32, i32
  }
  func.func @transform_7(%arg0: i32, %arg1: i32) -> (i32, i32) {
    %c0_i32 = arith.constant 0 : i32
    %c0_i32_0 = arith.constant 0 : i32
    %c0_i32_1 = arith.constant 0 : i32
    return %c0_i32, %c0_i32_0 : i32, i32
  }
  func.func @transform_8(%arg0: i32, %arg1: i32) -> (i32, i32) {
    %c0_i32 = arith.constant 0 : i32
    %c0_i32_0 = arith.constant 0 : i32
    %c0_i32_1 = arith.constant 0 : i32
    return %c0_i32, %c0_i32_0 : i32, i32
  }
  func.func @transform_9(%arg0: i32, %arg1: i32) -> (i32, i32) {
    %c0_i32 = arith.constant 0 : i32
    %c0_i32_0 = arith.constant 0 : i32
    %c0_i32_1 = arith.constant 0 : i32
    return %c0_i32, %c0_i32_0 : i32, i32
  }
  func.func @transform_10(%arg0: i32, %arg1: i32) -> (i32, i32) {
    %c0_i32 = arith.constant 0 : i32
    %c0_i32_0 = arith.constant 0 : i32
    %c0_i32_1 = arith.constant 0 : i32
    return %c0_i32, %c0_i32_0 : i32, i32
  }
  func.func @transform_11(%arg0: i32, %arg1: i32) -> (i32, i32) {
    %c0_i32 = arith.constant 0 : i32
    %c0_i32_0 = arith.constant 0 : i32
    %c0_i32_1 = arith.constant 0 : i32
    return %c0_i32, %c0_i32_0 : i32, i32
  }
  func.func @transform_12(%arg0: i32, %arg1: i32) -> (i32, i32) {
    %c0_i32 = arith.constant 0 : i32
    %c0_i32_0 = arith.constant 0 : i32
    %c0_i32_1 = arith.constant 0 : i32
    return %c0_i32, %c0_i32_0 : i32, i32
  }
  func.func @transform_13(%arg0: i32, %arg1: i32) -> (i32, i32) {
    %c0_i32 = arith.constant 0 : i32
    %c0_i32_0 = arith.constant 0 : i32
    %c0_i32_1 = arith.constant 0 : i32
    return %c0_i32, %c0_i32_0 : i32, i32
  }
  func.func @transform_14(%arg0: i32, %arg1: i32) -> (i32, i32) {
    %c0_i32 = arith.constant 0 : i32
    %c0_i32_0 = arith.constant 0 : i32
    %c0_i32_1 = arith.constant 0 : i32
    return %c0_i32, %c0_i32_0 : i32, i32
  }
  func.func @transform_15(%arg0: i32, %arg1: i32) -> (i32, i32) {
    %c0_i32 = arith.constant 0 : i32
    %c0_i32_0 = arith.constant 0 : i32
    %c0_i32_1 = arith.constant 0 : i32
    return %c0_i32, %c0_i32_0 : i32, i32
  }
  func.func @transform_16(%arg0: i32, %arg1: i32) -> (i32, i32) {
    %c0_i32 = arith.constant 0 : i32
    %c0_i32_0 = arith.constant 0 : i32
    %c0_i32_1 = arith.constant 0 : i32
    return %c0_i32, %c0_i32_0 : i32, i32
  }
  func.func @transform_17(%arg0: i32, %arg1: i32) -> (i32, i32) {
    %c0_i32 = arith.constant 0 : i32
    %c0_i32_0 = arith.constant 0 : i32
    %c0_i32_1 = arith.constant 0 : i32
    return %c0_i32, %c0_i32_0 : i32, i32
  }
  func.func @transform_18(%arg0: i32, %arg1: i32) -> (i32, i32, i32) {
    %c0_i32 = arith.constant 0 : i32
    %c0_i32_0 = arith.constant 0 : i32
    return %arg0, %arg1, %c0_i32 : i32, i32, i32
  }
}

</mosaic_0001>

<llo_original>
// kernel: tpu_custom_call.1
$region0: #{tpu_custom_call.1}
  #allocation0 [shape = 'u32[]', space=smem, size = 0x4, offset = 0x4, fixed_abs, tag = 'smem constant byte address 0x4 - core index']
  #allocation1 [shape = 'u32[144,128]{1,0:T(1,128)}', space=vmem, size = 0x12000, scoped, tag = 'internal scratch']
  #allocation2 [shape = 'bf16[4,8,8]{2,1,0:T(8,128)(2,1)}', space=vmem, size = 0x2000, scoped, tag = 'scratch operand']
  #allocation3 [shape = 'bf16[4,8,8]{2,1,0:T(8,128)(2,1)}', space=vmem, size = 0x2000, scoped, tag = 'scratch operand']
  %s0 = inlined_call_operand.vmem [shape: f32[2,8,32], index: 0, kind: input, shape index: {}]
  %s1 = inlined_call_operand.vmem [shape: f32[2,8,32], index: 1, kind: input, shape index: {}]
  %s2 = inlined_call_operand.vmem [shape: f32[1,32], index: 2, kind: input, shape index: {}]
  %s3 = inlined_call_operand.hbm [shape: f32[1,32], index: 3, kind: input, shape index: {}]
  %s4 = inlined_call_operand.hbm [shape: f32[1,32], index: 4, kind: input, shape index: {}]
  %s5 = inlined_call_operand.hbm [shape: f32[1,32], index: 5, kind: input, shape index: {}]
  %s6 = inlined_call_operand.vmem [shape: bf16[32,32], index: 6, kind: input, shape index: {}]
  %s7 = inlined_call_operand.hbm [shape: f32[1,32], index: 7, kind: input, shape index: {}]
  %s8 = inlined_call_operand.hbm [shape: bf16[32,32], index: 8, kind: input, shape index: {}]
  %s9 = inlined_call_operand.hbm [shape: f32[1,32], index: 9, kind: input, shape index: {}]
  %s10 = inlined_call_operand.vmem [shape: bf16[32,32], index: 10, kind: input, shape index: {}]
  %s11 = inlined_call_operand.hbm [shape: f32[1,32], index: 11, kind: input, shape index: {}]
  %s12 = inlined_call_operand.hbm [shape: bf16[32,32], index: 12, kind: input, shape index: {}]
  %s13 = inlined_call_operand.hbm [shape: f32[1,32], index: 13, kind: input, shape index: {}]
  %s14 = inlined_call_operand.vmem [shape: bf16[32,64], index: 14, kind: input, shape index: {}]
  %s15 = inlined_call_operand.vmem [shape: f32[1,64], index: 15, kind: input, shape index: {}]
  %s16 = inlined_call_operand.vmem [shape: bf16[64,32], index: 16, kind: input, shape index: {}]
  %s17 = inlined_call_operand.vmem [shape: f32[1,32], index: 17, kind: input, shape index: {}]
  %s18 = inlined_call_operand.hbm [shape: f32[2,8,32], index: 18, kind: output, shape index: {}]
  %s19 = sld [smem:[#allocation0]]
  $region145: #{tpu_custom_call.1} parent=0
    _
  %s21 = ssub.s32 1, %s19
  %s22 = scalar_select 0, %s21, %s19
  $region1: #{tpu_custom_call.1} parent=0
    #allocation4 [shape = 'u8[512]{0}', space=vmem, size = 0x400, scoped, tag = 'input window, operand 3, single buffered']
    #allocation5 [shape = 's32[2]{0}', space=sflag, size = 0x8, scoped, tag = 'scoped memory for tpu_custom_call.1']
    #allocation6 [shape = 's32[2]{0}', space=sflag, size = 0x8, scoped, tag = 'scoped memory for tpu_custom_call.1']
    #allocation7 [shape = 'u8[512]{0}', space=vmem, size = 0x400, scoped, tag = 'input window, operand 4, single buffered']
    #allocation8 [shape = 's32[1]{0}', space=sflag, size = 0x4, scoped, tag = 'scoped memory for tpu_custom_call.1']
    #allocation9 [shape = 'u8[512]{0}', space=vmem, size = 0x400, scoped, tag = 'input window, operand 5, single buffered']
    #allocation10 [shape = 'u8[512]{0}', space=vmem, size = 0x400, scoped, tag = 'input window, operand 7, single buffered']
    #allocation11 [shape = 's32[1]{0}', space=sflag, size = 0x4, scoped, tag = 'scoped memory for tpu_custom_call.1']
    #allocation12 [shape = 'u8[8192]{0}', space=vmem, size = 0x2000, scoped, tag = 'input window, operand 8, single buffered']
    #allocation13 [shape = 'u8[512]{0}', space=vmem, size = 0x400, scoped, tag = 'input window, operand 9, single buffered']
    #allocation14 [shape = 's32[1]{0}', space=sflag, size = 0x4, scoped, tag = 'scoped memory for tpu_custom_call.1']
    #allocation15 [shape = 'u8[512]{0}', space=vmem, size = 0x400, scoped, tag = 'input window, operand 11, single buffered']
    #allocation16 [shape = 'u8[8192]{0}', space=vmem, size = 0x2000, scoped, tag = 'input window, operand 12, single buffered']
    #allocation17 [shape = 's32[1]{0}', space=sflag, size = 0x4, scoped, tag = 'scoped memory for tpu_custom_call.1']
    #allocation18 [shape = 'u8[512]{0}', space=vmem, size = 0x400, scoped, tag = 'input window, operand 13, single buffered']
    #allocation19 [shape = 'u8[8192]{0}', space=vmem, size = 0x2000, scoped, tag = 'output window, operand 0']
    %23 = vsyncpa [#allocation5], 0
    %24 = vsyncpa [#allocation8], 0
    %25 = vsyncpa [#allocation11], 0
    %26 = vsyncpa [#allocation14], 0
    %27 = vsyncpa [#allocation17], 0
    %28 = vsyncpa [#allocation6], 0
    %s29 = scalar_lea.sflag [#allocation6], 1
    %30 = vsyncpa %s29, 0
    loop: start=0, step=1, limit=4
    $region2: #{tpu_custom_call.1} parent=1 // loop_pre_header
      _
    $region3: #{tpu_custom_call.1} parent=1 // loop_header
      %s32 = sphi 0, %s36
      %p33 = scmp.ge.s32.totalorder %s32, 4
      %s39 = sphi 0, %s51
      %s40 = sphi 0, %s47
      %s41 = sphi 0, %s39
      %s42 = sphi 0, %s40
      %s43 = sphi 0, %s41
      %s44 = sphi 0, %s42
      %s54 = sphi 0, %s56
      %s57 = sphi 0, %s54
      %s58 = sphi 0, %s57
      %s74 = sphi 0, %s58
      %s82 = sphi 0, %s84
      %s85 = sphi 0, %s82
      %s86 = sphi 0, %s85
      %s102 = sphi 0, %s86
      %s106 = sphi 0, %s106
      %s108 = sphi 0, %s106
      %s109 = sphi 0, %s108
      %s123 = sphi 0, %s109
      %s127 = sphi 0, %s127
      %s129 = sphi 0, %s127
      %s130 = sphi 0, %s129
      %s144 = sphi 0, %s130
      %s148 = sphi 0, %s148
      %s150 = sphi 0, %s148
      %s151 = sphi 0, %s150
      %s165 = sphi 0, %s151
      %s169 = sphi 0, %s169
      %s171 = sphi 0, %s169
      %s172 = sphi 0, %s171
      %s186 = sphi 0, %s172
      %s190 = sphi 0, %s190
      %s192 = sphi 0, %s190
      %s193 = sphi 0, %s192
      %s207 = sphi 0, %s193
      %s211 = sphi 0, %s211
      %s213 = sphi 0, %s211
      %s214 = sphi 0, %s213
      %s228 = sphi 0, %s214
      %s232 = sphi 0, %s232
      %s234 = sphi 0, %s232
      %s235 = sphi 0, %s234
      %s249 = sphi 0, %s235
      %s253 = sphi 0, %s253
      %s255 = sphi 0, %s253
      %s256 = sphi 0, %s255
      %s270 = sphi 0, %s256
      %s274 = sphi 0, %s274
      %s276 = sphi 0, %s274
      %s277 = sphi 0, %s276
      %s291 = sphi 0, %s277
      %s295 = sphi 0, %s295
      %s297 = sphi 0, %s295
      %s298 = sphi 0, %s297
      %s312 = sphi 0, %s298
      %s316 = sphi 0, %s316
      %s318 = sphi 0, %s316
      %s319 = sphi 0, %s318
      %s333 = sphi 0, %s319
      %s337 = sphi 0, %s337
      %s339 = sphi 0, %s337
      %s340 = sphi 0, %s339
      %s354 = sphi 0, %s340
      %s358 = sphi 0, %s358
      %s360 = sphi 0, %s358
      %s361 = sphi 0, %s360
      %s375 = sphi 0, %s361
      %s379 = sphi 0, %s379
      %s381 = sphi 0, %s379
      %s382 = sphi 0, %s381
      %s396 = sphi 0, %s382
      %s400 = sphi 0, %s400
      %s402 = sphi 0, %s400
      %s403 = sphi 0, %s402
      %s417 = sphi 0, %s403
      %s421 = sphi 0, %s421
      %s423 = sphi 0, %s421
      %s424 = sphi 0, %s423
      %s438 = sphi 0, %s424
      %s446 = sphi 0, %s448
      %s449 = sphi 0, %s446
      %s450 = sphi 0, %s449
      %s466 = sphi 0, %s450
    $region4: #{tpu_custom_call.1} parent=1 // loop_header_branch
      %35 = sbr.rel (%p33) target = $region8
    $region5: #{tpu_custom_call.1} parent=1 // loop_body
      %s37 = ssub.s32 %s32, 1
      %s38 = ssub.s32 %s32, 2
      %s45 = sadd.s32 1, %s40
      %p46 = scmp.ge.s32.totalorder %s45, 1
      %s47 = scalar_select %p46, 0, %s45
      %s48 = sadd.s32 1, %s39
      %s49 = scalar_select %p46, %s48, %s39
      %p50 = scmp.ge.s32.totalorder %s49, 2
      %s51 = scalar_select %p50, 0, %s49
      %s52 = ssub.s32 %s39, %s51
      %p53 = scmp.eq.s32.totalorder %s52, 0
      %s55 = sadd.s32 %s54, 1
      %s56 = scalar_select %p53, %s54, %s55
      %p59 = pneg %p53
      %p60 = scmp.eq.s32.totalorder %s32, 1
      %p61 = por %p59, %p60
      %p62 = scmp.ne.s32.totalorder %s54, %s57
      %p63 = scmp.eq.s32.totalorder %s32, 0
      %p64 = por %p62, %p63
      %p65 = scmp.ne.s32.totalorder %s54, %s57
      %p66 = scmp.eq.s32.totalorder %s37, 1
      %p67 = por %p65, %p66
      %p68 = scmp.ne.s32.totalorder %s57, %s58
      %p69 = scmp.eq.s32.totalorder %s37, 0
      %p70 = por %p68, %p69
      %p71 = scmp.ne.s32.totalorder %s57, %s58
      %p72 = scmp.eq.s32.totalorder %s38, 1
      %p73 = por %p71, %p72
      %p75 = scmp.ne.s32.totalorder %s58, %s74
      %p76 = scmp.eq.s32.totalorder %s38, 0
      %p77 = por %p75, %p76
      %s78 = ssub.s32 %s39, %s51
      %s79 = ssub.s32 %s40, %s47
      %s80 = sor.u32 %s78, %s79
      %p81 = scmp.eq.s32.totalorder %s80, 0
      %s83 = sadd.s32 %s82, 1
      %s84 = scalar_select %p81, %s82, %s83
      %p87 = pneg %p81
      %p88 = scmp.eq.s32.totalorder %s32, 1
      %p89 = por %p87, %p88
      %p90 = scmp.ne.s32.totalorder %s82, %s85
      %p91 = scmp.eq.s32.totalorder %s32, 0
      %p92 = por %p90, %p91
      %p93 = scmp.ne.s32.totalorder %s82, %s85
      %p94 = scmp.eq.s32.totalorder %s37, 1
      %p95 = por %p93, %p94
      %p96 = scmp.ne.s32.totalorder %s85, %s86
      %p97 = scmp.eq.s32.totalorder %s37, 0
      %p98 = por %p96, %p97
      %p99 = scmp.ne.s32.totalorder %s85, %s86
      %p100 = scmp.eq.s32.totalorder %s38, 1
      %p101 = por %p99, %p100
      %p103 = scmp.ne.s32.totalorder %s86, %s102
      %p104 = scmp.eq.s32.totalorder %s38, 0
      %p105 = por %p103, %p104
      %s107 = sadd.s32 %s106, 1
      %p110 = scmp.eq.s32.totalorder %s32, 1
      %p111 = scmp.ne.s32.totalorder %s106, %s108
      %p112 = scmp.eq.s32.totalorder %s32, 0
      %p113 = por %p111, %p112
      %p114 = scmp.ne.s32.totalorder %s106, %s108
      %p115 = scmp.eq.s32.totalorder %s37, 1
      %p116 = por %p114, %p115
      %p117 = scmp.ne.s32.totalorder %s108, %s109
      %p118 = scmp.eq.s32.totalorder %s37, 0
      %p119 = por %p117, %p118
      %p120 = scmp.ne.s32.totalorder %s108, %s109
      %p121 = scmp.eq.s32.totalorder %s38, 1
      %p122 = por %p120, %p121
      %p124 = scmp.ne.s32.totalorder %s109, %s123
      %p125 = scmp.eq.s32.totalorder %s38, 0
      %p126 = por %p124, %p125
      %s128 = sadd.s32 %s127, 1
      %p131 = scmp.eq.s32.totalorder %s32, 1
      %p132 = scmp.ne.s32.totalorder %s127, %s129
      %p133 = scmp.eq.s32.totalorder %s32, 0
      %p134 = por %p132, %p133
      %p135 = scmp.ne.s32.totalorder %s127, %s129
      %p136 = scmp.eq.s32.totalorder %s37, 1
      %p137 = por %p135, %p136
      %p138 = scmp.ne.s32.totalorder %s129, %s130
      %p139 = scmp.eq.s32.totalorder %s37, 0
      %p140 = por %p138, %p139
      %p141 = scmp.ne.s32.totalorder %s129, %s130
      %p142 = scmp.eq.s32.totalorder %s38, 1
      %p143 = por %p141, %p142
      %p145 = scmp.ne.s32.totalorder %s130, %s144
      %p146 = scmp.eq.s32.totalorder %s38, 0
      %p147 = por %p145, %p146
      %s149 = sadd.s32 %s148, 1
      %p152 = scmp.eq.s32.totalorder %s32, 1
      %p153 = scmp.ne.s32.totalorder %s148, %s150
      %p154 = scmp.eq.s32.totalorder %s32, 0
      %p155 = por %p153, %p154
      %p156 = scmp.ne.s32.totalorder %s148, %s150
      %p157 = scmp.eq.s32.totalorder %s37, 1
      %p158 = por %p156, %p157
      %p159 = scmp.ne.s32.totalorder %s150, %s151
      %p160 = scmp.eq.s32.totalorder %s37, 0
      %p161 = por %p159, %p160
      %p162 = scmp.ne.s32.totalorder %s150, %s151
      %p163 = scmp.eq.s32.totalorder %s38, 1
      %p164 = por %p162, %p163
      %p166 = scmp.ne.s32.totalorder %s151, %s165
      %p167 = scmp.eq.s32.totalorder %s38, 0
      %p168 = por %p166, %p167
      %s170 = sadd.s32 %s169, 1
      %p173 = scmp.eq.s32.totalorder %s32, 1
      %p174 = scmp.ne.s32.totalorder %s169, %s171
      %p175 = scmp.eq.s32.totalorder %s32, 0
      %p176 = por %p174, %p175
      %p177 = scmp.ne.s32.totalorder %s169, %s171
      %p178 = scmp.eq.s32.totalorder %s37, 1
      %p179 = por %p177, %p178
      %p180 = scmp.ne.s32.totalorder %s171, %s172
      %p181 = scmp.eq.s32.totalorder %s37, 0
      %p182 = por %p180, %p181
      %p183 = scmp.ne.s32.totalorder %s171, %s172
      %p184 = scmp.eq.s32.totalorder %s38, 1
      %p185 = por %p183, %p184
      %p187 = scmp.ne.s32.totalorder %s172, %s186
      %p188 = scmp.eq.s32.totalorder %s38, 0
      %p189 = por %p187, %p188
      %s191 = sadd.s32 %s190, 1
      %p194 = scmp.eq.s32.totalorder %s32, 1
      %p195 = scmp.ne.s32.totalorder %s190, %s192
      %p196 = scmp.eq.s32.totalorder %s32, 0
      %p197 = por %p195, %p196
      %p198 = scmp.ne.s32.totalorder %s190, %s192
      %p199 = scmp.eq.s32.totalorder %s37, 1
      %p200 = por %p198, %p199
      %p201 = scmp.ne.s32.totalorder %s192, %s193
      %p202 = scmp.eq.s32.totalorder %s37, 0
      %p203 = por %p201, %p202
      %p204 = scmp.ne.s32.totalorder %s192, %s193
      %p205 = scmp.eq.s32.totalorder %s38, 1
      %p206 = por %p204, %p205
      %p208 = scmp.ne.s32.totalorder %s193, %s207
      %p209 = scmp.eq.s32.totalorder %s38, 0
      %p210 = por %p208, %p209
      %s212 = sadd.s32 %s211, 1
      %p215 = scmp.eq.s32.totalorder %s32, 1
      %p216 = scmp.ne.s32.totalorder %s211, %s213
      %p217 = scmp.eq.s32.totalorder %s32, 0
      %p218 = por %p216, %p217
      %p219 = scmp.ne.s32.totalorder %s211, %s213
      %p220 = scmp.eq.s32.totalorder %s37, 1
      %p221 = por %p219, %p220
      %p222 = scmp.ne.s32.totalorder %s213, %s214
      %p223 = scmp.eq.s32.totalorder %s37, 0
      %p224 = por %p222, %p223
      %p225 = scmp.ne.s32.totalorder %s213, %s214
      %p226 = scmp.eq.s32.totalorder %s38, 1
      %p227 = por %p225, %p226
      %p229 = scmp.ne.s32.totalorder %s214, %s228
      %p230 = scmp.eq.s32.totalorder %s38, 0
      %p231 = por %p229, %p230
      %s233 = sadd.s32 %s232, 1
      %p236 = scmp.eq.s32.totalorder %s32, 1
      %p237 = scmp.ne.s32.totalorder %s232, %s234
      %p238 = scmp.eq.s32.totalorder %s32, 0
      %p239 = por %p237, %p238
      %p240 = scmp.ne.s32.totalorder %s232, %s234
      %p241 = scmp.eq.s32.totalorder %s37, 1
      %p242 = por %p240, %p241
      %p243 = scmp.ne.s32.totalorder %s234, %s235
      %p244 = scmp.eq.s32.totalorder %s37, 0
      %p245 = por %p243, %p244
      %p246 = scmp.ne.s32.totalorder %s234, %s235
      %p247 = scmp.eq.s32.totalorder %s38, 1
      %p248 = por %p246, %p247
      %p250 = scmp.ne.s32.totalorder %s235, %s249
      %p251 = scmp.eq.s32.totalorder %s38, 0
      %p252 = por %p250, %p251
      %s254 = sadd.s32 %s253, 1
      %p257 = scmp.eq.s32.totalorder %s32, 1
      %p258 = scmp.ne.s32.totalorder %s253, %s255
      %p259 = scmp.eq.s32.totalorder %s32, 0
      %p260 = por %p258, %p259
      %p261 = scmp.ne.s32.totalorder %s253, %s255
      %p262 = scmp.eq.s32.totalorder %s37, 1
      %p263 = por %p261, %p262
      %p264 = scmp.ne.s32.totalorder %s255, %s256
      %p265 = scmp.eq.s32.totalorder %s37, 0
      %p266 = por %p264, %p265
      %p267 = scmp.ne.s32.totalorder %s255, %s256
      %p268 = scmp.eq.s32.totalorder %s38, 1
      %p269 = por %p267, %p268
      %p271 = scmp.ne.s32.totalorder %s256, %s270
      %p272 = scmp.eq.s32.totalorder %s38, 0
      %p273 = por %p271, %p272
      %s275 = sadd.s32 %s274, 1
      %p278 = scmp.eq.s32.totalorder %s32, 1
      %p279 = scmp.ne.s32.totalorder %s274, %s276
      %p280 = scmp.eq.s32.totalorder %s32, 0
      %p281 = por %p279, %p280
      %p282 = scmp.ne.s32.totalorder %s274, %s276
      %p283 = scmp.eq.s32.totalorder %s37, 1
      %p284 = por %p282, %p283
      %p285 = scmp.ne.s32.totalorder %s276, %s277
      %p286 = scmp.eq.s32.totalorder %s37, 0
      %p287 = por %p285, %p286
      %p288 = scmp.ne.s32.totalorder %s276, %s277
      %p289 = scmp.eq.s32.totalorder %s38, 1
      %p290 = por %p288, %p289
      %p292 = scmp.ne.s32.totalorder %s277, %s291
      %p293 = scmp.eq.s32.totalorder %s38, 0
      %p294 = por %p292, %p293
      %s296 = sadd.s32 %s295, 1
      %p299 = scmp.eq.s32.totalorder %s32, 1
      %p300 = scmp.ne.s32.totalorder %s295, %s297
      %p301 = scmp.eq.s32.totalorder %s32, 0
      %p302 = por %p300, %p301
      %p303 = scmp.ne.s32.totalorder %s295, %s297
      %p304 = scmp.eq.s32.totalorder %s37, 1
      %p305 = por %p303, %p304
      %p306 = scmp.ne.s32.totalorder %s297, %s298
      %p307 = scmp.eq.s32.totalorder %s37, 0
      %p308 = por %p306, %p307
      %p309 = scmp.ne.s32.totalorder %s297, %s298
      %p310 = scmp.eq.s32.totalorder %s38, 1
      %p311 = por %p309, %p310
      %p313 = scmp.ne.s32.totalorder %s298, %s312
      %p314 = scmp.eq.s32.totalorder %s38, 0
      %p315 = por %p313, %p314
      %s317 = sadd.s32 %s316, 1
      %p320 = scmp.eq.s32.totalorder %s32, 1
      %p321 = scmp.ne.s32.totalorder %s316, %s318
      %p322 = scmp.eq.s32.totalorder %s32, 0
      %p323 = por %p321, %p322
      %p324 = scmp.ne.s32.totalorder %s316, %s318
      %p325 = scmp.eq.s32.totalorder %s37, 1
      %p326 = por %p324, %p325
      %p327 = scmp.ne.s32.totalorder %s318, %s319
      %p328 = scmp.eq.s32.totalorder %s37, 0
      %p329 = por %p327, %p328
      %p330 = scmp.ne.s32.totalorder %s318, %s319
      %p331 = scmp.eq.s32.totalorder %s38, 1
      %p332 = por %p330, %p331
      %p334 = scmp.ne.s32.totalorder %s319, %s333
      %p335 = scmp.eq.s32.totalorder %s38, 0
      %p336 = por %p334, %p335
      %s338 = sadd.s32 %s337, 1
      %p341 = scmp.eq.s32.totalorder %s32, 1
      %p342 = scmp.ne.s32.totalorder %s337, %s339
      %p343 = scmp.eq.s32.totalorder %s32, 0
      %p344 = por %p342, %p343
      %p345 = scmp.ne.s32.totalorder %s337, %s339
      %p346 = scmp.eq.s32.totalorder %s37, 1
      %p347 = por %p345, %p346
      %p348 = scmp.ne.s32.totalorder %s339, %s340
      %p349 = scmp.eq.s32.totalorder %s37, 0
      %p350 = por %p348, %p349
      %p351 = scmp.ne.s32.totalorder %s339, %s340
      %p352 = scmp.eq.s32.totalorder %s38, 1
      %p353 = por %p351, %p352
      %p355 = scmp.ne.s32.totalorder %s340, %s354
      %p356 = scmp.eq.s32.totalorder %s38, 0
      %p357 = por %p355, %p356
      %s359 = sadd.s32 %s358, 1
      %p362 = scmp.eq.s32.totalorder %s32, 1
      %p363 = scmp.ne.s32.totalorder %s358, %s360
      %p364 = scmp.eq.s32.totalorder %s32, 0
      %p365 = por %p363, %p364
      %p366 = scmp.ne.s32.totalorder %s358, %s360
      %p367 = scmp.eq.s32.totalorder %s37, 1
      %p368 = por %p366, %p367
      %p369 = scmp.ne.s32.totalorder %s360, %s361
      %p370 = scmp.eq.s32.totalorder %s37, 0
      %p371 = por %p369, %p370
      %p372 = scmp.ne.s32.totalorder %s360, %s361
      %p373 = scmp.eq.s32.totalorder %s38, 1
      %p374 = por %p372, %p373
      %p376 = scmp.ne.s32.totalorder %s361, %s375
      %p377 = scmp.eq.s32.totalorder %s38, 0
      %p378 = por %p376, %p377
      %s380 = sadd.s32 %s379, 1
      %p383 = scmp.eq.s32.totalorder %s32, 1
      %p384 = scmp.ne.s32.totalorder %s379, %s381
      %p385 = scmp.eq.s32.totalorder %s32, 0
      %p386 = por %p384, %p385
      %p387 = scmp.ne.s32.totalorder %s379, %s381
      %p388 = scmp.eq.s32.totalorder %s37, 1
      %p389 = por %p387, %p388
      %p390 = scmp.ne.s32.totalorder %s381, %s382
      %p391 = scmp.eq.s32.totalorder %s37, 0
      %p392 = por %p390, %p391
      %p393 = scmp.ne.s32.totalorder %s381, %s382
      %p394 = scmp.eq.s32.totalorder %s38, 1
      %p395 = por %p393, %p394
      %p397 = scmp.ne.s32.totalorder %s382, %s396
      %p398 = scmp.eq.s32.totalorder %s38, 0
      %p399 = por %p397, %p398
      %s401 = sadd.s32 %s400, 1
      %p404 = scmp.eq.s32.totalorder %s32, 1
      %p405 = scmp.ne.s32.totalorder %s400, %s402
      %p406 = scmp.eq.s32.totalorder %s32, 0
      %p407 = por %p405, %p406
      %p408 = scmp.ne.s32.totalorder %s400, %s402
      %p409 = scmp.eq.s32.totalorder %s37, 1
      %p410 = por %p408, %p409
      %p411 = scmp.ne.s32.totalorder %s402, %s403
      %p412 = scmp.eq.s32.totalorder %s37, 0
      %p413 = por %p411, %p412
      %p414 = scmp.ne.s32.totalorder %s402, %s403
      %p415 = scmp.eq.s32.totalorder %s38, 1
      %p416 = por %p414, %p415
      %p418 = scmp.ne.s32.totalorder %s403, %s417
      %p419 = scmp.eq.s32.totalorder %s38, 0
      %p420 = por %p418, %p419
      %s422 = sadd.s32 %s421, 1
      %p425 = scmp.eq.s32.totalorder %s32, 1
      %p426 = scmp.ne.s32.totalorder %s421, %s423
      %p427 = scmp.eq.s32.totalorder %s32, 0
      %p428 = por %p426, %p427
      %p429 = scmp.ne.s32.totalorder %s421, %s423
      %p430 = scmp.eq.s32.totalorder %s37, 1
      %p431 = por %p429, %p430
      %p432 = scmp.ne.s32.totalorder %s423, %s424
      %p433 = scmp.eq.s32.totalorder %s37, 0
      %p434 = por %p432, %p433
      %p435 = scmp.ne.s32.totalorder %s423, %s424
      %p436 = scmp.eq.s32.totalorder %s38, 1
      %p437 = por %p435, %p436
      %p439 = scmp.ne.s32.totalorder %s424, %s438
      %p440 = scmp.eq.s32.totalorder %s38, 0
      %p441 = por %p439, %p440
      %s442 = ssub.s32 %s39, %s51
      %s443 = ssub.s32 %s40, %s47
      %s444 = sor.u32 %s442, %s443
      %p445 = scmp.eq.s32.totalorder %s444, 0
      %s447 = sadd.s32 %s446, 1
      %s448 = scalar_select %p445, %s446, %s447
      %p451 = pneg %p445
      %p452 = scmp.eq.s32.totalorder %s32, 1
      %p453 = por %p451, %p452
      %p454 = scmp.ne.s32.totalorder %s446, %s449
      %p455 = scmp.eq.s32.totalorder %s32, 0
      %p456 = por %p454, %p455
      %p457 = scmp.ne.s32.totalorder %s446, %s449
      %p458 = scmp.eq.s32.totalorder %s37, 1
      %p459 = por %p457, %p458
      %p460 = scmp.ne.s32.totalorder %s449, %s450
      %p461 = scmp.eq.s32.totalorder %s37, 0
      %p462 = por %p460, %p461
      %p463 = scmp.ne.s32.totalorder %s449, %s450
      %p464 = scmp.eq.s32.totalorder %s38, 1
      %p465 = por %p463, %p464
      %p467 = scmp.ne.s32.totalorder %s450, %s466
      %p468 = scmp.eq.s32.totalorder %s38, 0
      %p469 = por %p467, %p468
      %p470 = scmp.le.s32.totalorder 1, %s32
      %p471 = scmp.lt.s32.totalorder %s32, 3
      %p472 = pnand %p470, %p471
      %p473 = pneg %p472
      // Predicated region
      $region9: #{tpu_custom_call.1} parent=5 // pred_check
        _
      $region10: #{tpu_custom_call.1} parent=5 // pred_check_branch
        %475 = sbr.rel (%p472) target = $region12
      $region11: #{tpu_custom_call.1} parent=5 // pred_region
        %s476 = ssub.s32 %s32, 1
        // Predicated region
        $region13: #{tpu_custom_call.1} parent=11 // pred_check
          %p477 = pneg %p119
        $region14: #{tpu_custom_call.1} parent=11 // pred_check_branch
          %479 = sbr.rel (%p477) target = $region16
        $region15: #{tpu_custom_call.1} parent=11 // pred_region
          _
        $region16: #{tpu_custom_call.1} parent=11 // pred_fallthru
          _
        // Predicated region
        $region17: #{tpu_custom_call.1} parent=11 // pred_check
          %p480 = pneg %p140
        $region18: #{tpu_custom_call.1} parent=11 // pred_check_branch
          %482 = sbr.rel (%p480) target = $region20
        $region19: #{tpu_custom_call.1} parent=11 // pred_region
          %s484 = ssub.s32 16, 16
          %485 = vsyncadd [#allocation5], %s484
          %s487 = sshll.u32 [#allocation4], 4
          %s488 = int_to_ptr.vmem [resolvable:$true] %s487
          %490 = dma.hbm_to_vmem [thread:$0]  %s3, 16, %s488, [#allocation5]
        $region20: #{tpu_custom_call.1} parent=11 // pred_fallthru
          _
        // Predicated region
        $region21: #{tpu_custom_call.1} parent=11 // pred_check
          %p491 = pneg %p161
        $region22: #{tpu_custom_call.1} parent=11 // pred_check_branch
          %493 = sbr.rel (%p491) target = $region24
        $region23: #{tpu_custom_call.1} parent=11 // pred_region
          %s495 = ssub.s32 16, 16
          %496 = vsyncadd [#allocation8], %s495
          %s498 = sshll.u32 [#allocation7], 4
          %s499 = int_to_ptr.vmem [resolvable:$true] %s498
          %501 = dma.hbm_to_vmem [thread:$0]  %s4, 16, %s499, [#allocation8]
        $region24: #{tpu_custom_call.1} parent=11 // pred_fallthru
          _
        // Predicated region
        $region25: #{tpu_custom_call.1} parent=11 // pred_check
          %p502 = pneg %p182
        $region26: #{tpu_custom_call.1} parent=11 // pred_check_branch
          %504 = sbr.rel (%p502) target = $region28
        $region27: #{tpu_custom_call.1} parent=11 // pred_region
          %s506 = ssub.s32 16, 16
          %507 = vsyncadd [#allocation8], %s506
          %s509 = sshll.u32 [#allocation9], 4
          %s510 = int_to_ptr.vmem [resolvable:$true] %s509
          %512 = dma.hbm_to_vmem [thread:$0]  %s5, 16, %s510, [#allocation8]
        $region28: #{tpu_custom_call.1} parent=11 // pred_fallthru
          _
        // Predicated region
        $region29: #{tpu_custom_call.1} parent=11 // pred_check
          %p513 = pneg %p203
        $region30: #{tpu_custom_call.1} parent=11 // pred_check_branch
          %515 = sbr.rel (%p513) target = $region32
        $region31: #{tpu_custom_call.1} parent=11 // pred_region
          _
        $region32: #{tpu_custom_call.1} parent=11 // pred_fallthru
          _
        // Predicated region
        $region33: #{tpu_custom_call.1} parent=11 // pred_check
          %p516 = pneg %p224
        $region34: #{tpu_custom_call.1} parent=11 // pred_check_branch
          %518 = sbr.rel (%p516) target = $region36
        $region35: #{tpu_custom_call.1} parent=11 // pred_region
          %s520 = ssub.s32 16, 16
          %521 = vsyncadd [#allocation11], %s520
          %s523 = sshll.u32 [#allocation10], 4
          %s524 = int_to_ptr.vmem [resolvable:$true] %s523
          %526 = dma.hbm_to_vmem [thread:$0]  %s7, 16, %s524, [#allocation11]
        $region36: #{tpu_custom_call.1} parent=11 // pred_fallthru
          _
        // Predicated region
        $region37: #{tpu_custom_call.1} parent=11 // pred_check
          %p527 = pneg %p245
        $region38: #{tpu_custom_call.1} parent=11 // pred_check_branch
          %529 = sbr.rel (%p527) target = $region40
        $region39: #{tpu_custom_call.1} parent=11 // pred_region
          %s531 = ssub.s32 256, 256
          %532 = vsyncadd [#allocation11], %s531
          %s533 = sshll.u32 [#allocation12], 4
          %s534 = int_to_ptr.vmem [resolvable:$true] %s533
          %539 = dma.hbm_to_vmem [thread:$0]  %s8, 256, %s534, [#allocation11], 64, 64, 4
        $region40: #{tpu_custom_call.1} parent=11 // pred_fallthru
          _
        // Predicated region
        $region41: #{tpu_custom_call.1} parent=11 // pred_check
          %p540 = pneg %p266
        $region42: #{tpu_custom_call.1} parent=11 // pred_check_branch
          %542 = sbr.rel (%p540) target = $region44
        $region43: #{tpu_custom_call.1} parent=11 // pred_region
          %s544 = ssub.s32 16, 16
          %545 = vsyncadd [#allocation14], %s544
          %s547 = sshll.u32 [#allocation13], 4
          %s548 = int_to_ptr.vmem [resolvable:$true] %s547
          %550 = dma.hbm_to_vmem [thread:$0]  %s9, 16, %s548, [#allocation14]
        $region44: #{tpu_custom_call.1} parent=11 // pred_fallthru
          _
        // Predicated region
        $region45: #{tpu_custom_call.1} parent=11 // pred_check
          %p551 = pneg %p287
        $region46: #{tpu_custom_call.1} parent=11 // pred_check_branch
          %553 = sbr.rel (%p551) target = $region48
        $region47: #{tpu_custom_call.1} parent=11 // pred_region
          _
        $region48: #{tpu_custom_call.1} parent=11 // pred_fallthru
          _
        // Predicated region
        $region49: #{tpu_custom_call.1} parent=11 // pred_check
          %p554 = pneg %p308
        $region50: #{tpu_custom_call.1} parent=11 // pred_check_branch
          %556 = sbr.rel (%p554) target = $region52
        $region51: #{tpu_custom_call.1} parent=11 // pred_region
          %s558 = ssub.s32 16, 16
          %559 = vsyncadd [#allocation14], %s558
          %s561 = sshll.u32 [#allocation15], 4
          %s562 = int_to_ptr.vmem [resolvable:$true] %s561
          %564 = dma.hbm_to_vmem [thread:$0]  %s11, 16, %s562, [#allocation14]
        $region52: #{tpu_custom_call.1} parent=11 // pred_fallthru
          _
        // Predicated region
        $region53: #{tpu_custom_call.1} parent=11 // pred_check
          %p565 = pneg %p329
        $region54: #{tpu_custom_call.1} parent=11 // pred_check_branch
          %567 = sbr.rel (%p565) target = $region56
        $region55: #{tpu_custom_call.1} parent=11 // pred_region
          %s569 = ssub.s32 256, 256
          %570 = vsyncadd [#allocation17], %s569
          %s571 = sshll.u32 [#allocation16], 4
          %s572 = int_to_ptr.vmem [resolvable:$true] %s571
          %577 = dma.hbm_to_vmem [thread:$0]  %s12, 256, %s572, [#allocation17], 64, 64, 4
        $region56: #{tpu_custom_call.1} parent=11 // pred_fallthru
          _
        // Predicated region
        $region57: #{tpu_custom_call.1} parent=11 // pred_check
          %p578 = pneg %p350
        $region58: #{tpu_custom_call.1} parent=11 // pred_check_branch
          %580 = sbr.rel (%p578) target = $region60
        $region59: #{tpu_custom_call.1} parent=11 // pred_region
          %s582 = ssub.s32 16, 16
          %583 = vsyncadd [#allocation17], %s582
          %s585 = sshll.u32 [#allocation18], 4
          %s586 = int_to_ptr.vmem [resolvable:$true] %s585
          %588 = dma.hbm_to_vmem [thread:$0]  %s13, 16, %s586, [#allocation17]
        $region60: #{tpu_custom_call.1} parent=11 // pred_fallthru
          _
        // Predicated region
        $region61: #{tpu_custom_call.1} parent=11 // pred_check
          %p589 = pneg %p371
        $region62: #{tpu_custom_call.1} parent=11 // pred_check_branch
          %591 = sbr.rel (%p589) target = $region64
        $region63: #{tpu_custom_call.1} parent=11 // pred_region
          _
        $region64: #{tpu_custom_call.1} parent=11 // pred_fallthru
          _
        // Predicated region
        $region65: #{tpu_custom_call.1} parent=11 // pred_check
          %p592 = pneg %p392
        $region66: #{tpu_custom_call.1} parent=11 // pred_check_branch
          %594 = sbr.rel (%p592) target = $region68
        $region67: #{tpu_custom_call.1} parent=11 // pred_region
          _
        $region68: #{tpu_custom_call.1} parent=11 // pred_fallthru
          _
        // Predicated region
        $region69: #{tpu_custom_call.1} parent=11 // pred_check
          %p595 = pneg %p413
        $region70: #{tpu_custom_call.1} parent=11 // pred_check_branch
          %597 = sbr.rel (%p595) target = $region72
        $region71: #{tpu_custom_call.1} parent=11 // pred_region
          _
        $region72: #{tpu_custom_call.1} parent=11 // pred_fallthru
          _
        // Predicated region
        $region73: #{tpu_custom_call.1} parent=11 // pred_check
          %p598 = pneg %p434
        $region74: #{tpu_custom_call.1} parent=11 // pred_check_branch
          %600 = sbr.rel (%p598) target = $region76
        $region75: #{tpu_custom_call.1} parent=11 // pred_region
          _
        $region76: #{tpu_custom_call.1} parent=11 // pred_fallthru
          _
      $region12: #{tpu_custom_call.1} parent=5 // pred_fallthru
        _
      %p601 = scmp.lt.s32.totalorder %s32, 2
      // Predicated region
      $region77: #{tpu_custom_call.1} parent=5 // pred_check
        %p602 = pneg %p601
      $region78: #{tpu_custom_call.1} parent=5 // pred_check_branch
        %604 = sbr.rel (%p602) target = $region80
      $region79: #{tpu_custom_call.1} parent=5 // pred_region
        // Predicated region
        $region81: #{tpu_custom_call.1} parent=79 // pred_check
          %p605 = pneg %p64
        $region82: #{tpu_custom_call.1} parent=79 // pred_check_branch
          %607 = sbr.rel (%p605) target = $region84
        $region83: #{tpu_custom_call.1} parent=79 // pred_region
          %p608 = scmp.lt.s32.totalorder %s39, 1
          %s609 = scalar_select %p608, %s39, 1
          %s610 = smul.addr %s609, 8
          %s611 = scalar_lea.vmem %s0, %s610
        $region84: #{tpu_custom_call.1} parent=79 // pred_fallthru
          _
        // Predicated region
        $region85: #{tpu_custom_call.1} parent=79 // pred_check
          %p612 = pneg %p92
        $region86: #{tpu_custom_call.1} parent=79 // pred_check_branch
          %614 = sbr.rel (%p612) target = $region88
        $region87: #{tpu_custom_call.1} parent=79 // pred_region
          %p615 = scmp.lt.s32.totalorder %s39, 1
          %s616 = scalar_select %p615, %s39, 1
          %p617 = scmp.lt.s32.totalorder %s40, 0
          %s618 = scalar_select %p617, %s40, 0
          %s619 = sadd.s32 %s618, %s616
          %s620 = smul.addr %s619, 8
          %s621 = scalar_lea.vmem %s1, %s620
        $region88: #{tpu_custom_call.1} parent=79 // pred_fallthru
          _
      $region80: #{tpu_custom_call.1} parent=5 // pred_fallthru
        _
      %p622 = scmp.le.s32.totalorder 1, %s32
      %p623 = scmp.lt.s32.totalorder %s32, 3
      %p624 = pnand %p622, %p623
      %p625 = pneg %p624
      // Predicated region
      $region89: #{tpu_custom_call.1} parent=5 // pred_check
        _
      $region90: #{tpu_custom_call.1} parent=5 // pred_check_branch
        %627 = sbr.rel (%p624) target = $region92
      $region91: #{tpu_custom_call.1} parent=5 // pred_region
        %s628 = ssub.s32 %s32, 1
        // Predicated region
        $region93: #{tpu_custom_call.1} parent=91 // pred_check
          %p629 = pneg %p140
        $region94: #{tpu_custom_call.1} parent=91 // pred_check_branch
          %631 = sbr.rel (%p629) target = $region96
        $region95: #{tpu_custom_call.1} parent=91 // pred_region
          %632 = dma.done [#allocation5], 16
        $region96: #{tpu_custom_call.1} parent=91 // pred_fallthru
          _
        // Predicated region
        $region97: #{tpu_custom_call.1} parent=91 // pred_check
          %p633 = pneg %p161
        $region98: #{tpu_custom_call.1} parent=91 // pred_check_branch
          %635 = sbr.rel (%p633) target = $region100
        $region99: #{tpu_custom_call.1} parent=91 // pred_region
          %636 = dma.done [#allocation8], 16
        $region100: #{tpu_custom_call.1} parent=91 // pred_fallthru
          _
        // Predicated region
        $region101: #{tpu_custom_call.1} parent=91 // pred_check
          %p637 = pneg %p182
        $region102: #{tpu_custom_call.1} parent=91 // pred_check_branch
          %639 = sbr.rel (%p637) target = $region104
        $region103: #{tpu_custom_call.1} parent=91 // pred_region
          %640 = dma.done [#allocation8], 16
        $region104: #{tpu_custom_call.1} parent=91 // pred_fallthru
          _
        // Predicated region
        $region105: #{tpu_custom_call.1} parent=91 // pred_check
          %p641 = pneg %p224
        $region106: #{tpu_custom_call.1} parent=91 // pred_check_branch
          %643 = sbr.rel (%p641) target = $region108
        $region107: #{tpu_custom_call.1} parent=91 // pred_region
          %644 = dma.done [#allocation11], 16
        $region108: #{tpu_custom_call.1} parent=91 // pred_fallthru
          _
        // Predicated region
        $region109: #{tpu_custom_call.1} parent=91 // pred_check
          %p645 = pneg %p245
        $region110: #{tpu_custom_call.1} parent=91 // pred_check_branch
          %647 = sbr.rel (%p645) target = $region112
        $region111: #{tpu_custom_call.1} parent=91 // pred_region
          %648 = dma.done [#allocation11], 256
        $region112: #{tpu_custom_call.1} parent=91 // pred_fallthru
          _
        // Predicated region
        $region113: #{tpu_custom_call.1} parent=91 // pred_check
          %p649 = pneg %p266
        $region114: #{tpu_custom_call.1} parent=91 // pred_check_branch
          %651 = sbr.rel (%p649) target = $region116
        $region115: #{tpu_custom_call.1} parent=91 // pred_region
          %652 = dma.done [#allocation14], 16
        $region116: #{tpu_custom_call.1} parent=91 // pred_fallthru
          _
        // Predicated region
        $region117: #{tpu_custom_call.1} parent=91 // pred_check
          %p653 = pneg %p308
        $region118: #{tpu_custom_call.1} parent=91 // pred_check_branch
          %655 = sbr.rel (%p653) target = $region120
        $region119: #{tpu_custom_call.1} parent=91 // pred_region
          %656 = dma.done [#allocation14], 16
        $region120: #{tpu_custom_call.1} parent=91 // pred_fallthru
          _
        // Predicated region
        $region121: #{tpu_custom_call.1} parent=91 // pred_check
          %p657 = pneg %p329
        $region122: #{tpu_custom_call.1} parent=91 // pred_check_branch
          %659 = sbr.rel (%p657) target = $region124
        $region123: #{tpu_custom_call.1} parent=91 // pred_region
          %660 = dma.done [#allocation17], 256
        $region124: #{tpu_custom_call.1} parent=91 // pred_fallthru
          _
        // Predicated region
        $region125: #{tpu_custom_call.1} parent=91 // pred_check
          %p661 = pneg %p350
        $region126: #{tpu_custom_call.1} parent=91 // pred_check_branch
          %663 = sbr.rel (%p661) target = $region128
        $region127: #{tpu_custom_call.1} parent=91 // pred_region
          %664 = dma.done [#allocation17], 16
        $region128: #{tpu_custom_call.1} parent=91 // pred_fallthru
          _
        %p665 = scmp.lt.s32.totalorder %s41, 1
        %s666 = scalar_select %p665, %s41, 1
        %s667 = smul.addr %s666, 8
        %s668 = scalar_lea.vmem %s0, %s667
        %p669 = pneg %p70
        %p670 = pneg %p67
        %p671 = scmp.lt.s32.totalorder %s41, 1
        %s672 = scalar_select %p671, %s41, 1
        %p673 = scmp.lt.s32.totalorder %s42, 0
        %s674 = scalar_select %p673, %s42, 0
        %s675 = sadd.s32 %s674, %s672
        %s676 = smul.addr %s675, 8
        %s677 = scalar_lea.vmem %s1, %s676
        %p678 = pneg %p98
        %p679 = pneg %p95
        %p680 = pneg %p119
        %p681 = pneg %p116
        %p682 = pneg %p140
        %p683 = pneg %p137
        %p684 = pneg %p161
        %p685 = pneg %p158
        %p686 = pneg %p182
        %p687 = pneg %p179
        %p688 = pneg %p203
        %p689 = pneg %p200
        %p690 = pneg %p224
        %p691 = pneg %p221
        %p692 = pneg %p245
        %p693 = pneg %p242
        %p694 = pneg %p266
        %p695 = pneg %p263
        %p696 = pneg %p287
        %p697 = pneg %p284
        %p698 = pneg %p308
        %p699 = pneg %p305
        %p700 = pneg %p329
        %p701 = pneg %p326
        %p702 = pneg %p350
        %p703 = pneg %p347
        %p704 = pneg %p371
        %p705 = pneg %p368
        %p706 = pneg %p392
        %p707 = pneg %p389
        %p708 = pneg %p413
        %p709 = pneg %p410
        %p710 = pneg %p434
        %p711 = pneg %p431
        %p712 = pneg %p462
        %p713 = pneg %p459
        %s714 = sand.u32 %s449, 1
        %s715 = scalar_lea.sflag [#allocation6], %s714
        %s716 = sand.u32 %s449, 1
        %s717 = smul.addr %s716, 8
        %s718 = scalar_lea.vmem [#allocation19], %s717
        %p719 = scmp.lt.s32.totalorder %s41, 1
        %s720 = scalar_select %p719, %s41, 1
        %s721 = smul.addr %s720, 8
        %s722 = scalar_lea.vmem %s0, %s721
        %p723 = scmp.lt.s32.totalorder %s41, 1
        %s724 = scalar_select %p723, %s41, 1
        %p725 = scmp.lt.s32.totalorder %s42, 0
        %s726 = scalar_select %p725, %s42, 0
        %s727 = sadd.s32 %s726, %s724
        %s728 = smul.addr %s727, 8
        %s729 = scalar_lea.vmem %s1, %s728
        %v731 = vld [vmem:[%s2] sm:$0x1]
        %v732 = vld [vmem:[#allocation4] sm:$0x1]
        %p733 = scmp.eq.s32.totalorder %s42, 0
        // Predicated region
        $region129: #{tpu_custom_call.1} parent=91 // pred_check
          %p734 = pneg %p733
        $region130: #{tpu_custom_call.1} parent=91 // pred_check_branch
          %736 = sbr.rel (%p734) target = $region132
        $region131: #{tpu_custom_call.1} parent=91 // pred_region
          %v737 = vld [vmem:[%s722] sm:$0xff]
          %vm738 = vcmask 261120
          %v739 = vsel %vm738, %v737, 0.0
          %740 = vadd.xlane.f32.xlu0 %v739
          %v741 = vpop.xlane.xlu0 %740
          %v742 = vrcp.pop 32.0
          %v743 = vmul.f32 %v741, %v742
          %v744 = vsub.f32 %v737, %v743
          %v745 = vmul.f32 %v744, %v744
          %v746 = vsel %vm738, %v745, 0.0
          %747 = vadd.xlane.f32.xlu0 %v746
          %v748 = vpop.xlane.xlu0 %747
          %v749 = vmul.f32 %v748, %v742
          %v750 = vadd.f32 %v749, 1e-05
          %v751 = vrsqrt.pop %v750
          %v752 = vmul.f32 %v744, %v751
          %v754 = vlaneseq
          %v755 = vshrl.u32 %v754, 7
          %v756 = vsub.s32 0, %v755
          %v757 = vrot.slane %v731, %v756
          %v759 = vmul.f32 %v752, %v757
          %v761 = vlaneseq
          %v762 = vshrl.u32 %v761, 7
          %v763 = vsub.s32 0, %v762
          %v764 = vrot.slane %v732, %v763
          %v766 = vadd.f32 %v759, %v764
          %v767 = vpack.c.bf16 %v766, %v766
          %v768 = vld [vmem:[#allocation12] sm:$0xf]
          %v769 = vld [vmem:[#allocation12 + $0x4] sm:$0xf]
          %v770 = vld [vmem:[#allocation12 + $0x8] sm:$0xf]
          %v771 = vld [vmem:[#allocation12 + $0xc] sm:$0xf]
          %v772 = vld [vmem:[#allocation13] sm:$0x1]
          %v774 = vlaneseq
          %v775 = vshrl.u32 %v774, 7
          %v776 = vsub.s32 0, %v775
          %v777 = vrot.slane %v772, %v776
          %v783 = vunpack.c.l.b16 %v768
          %v784 = vunpack.c.l.b16 %v769
          %v785 = vunpack.c.l.b16 %v770
          %v786 = vunpack.c.l.b16 %v771
          %v787 = vpack.c.b16 %v784, %v783
          %v788 = vpack.c.b16 %v786, %v785
          %v792 = vsel %vm738, %v767, 0
          %794 = vmatprep.subr.bf16.mxu0 0
          %795 = vmatpush1.bf16.msra.mxu0 %v787
          %796 = vmatprep.subr.bf16.mxu0 0
          %797 = vmatpush1.bf16.msra.mxu0 %v788
          %798 = vmatprep.subr.bf16.mxu0 0
          %799 = vmatpush1.bf16.msra.mxu0 0
          %800 = vmatprep.subr.bf16.mxu0 0
          %801 = vmatpush1.bf16.msra.mxu0 0
          %802 = vmatprep.subr.bf16.mxu0 0
          %803 = vmatpush1.bf16.msra.mxu0 0
          %804 = vmatprep.subr.bf16.mxu0 0
          %805 = vmatpush1.bf16.msra.mxu0 0
          %806 = vmatprep.subr.bf16.mxu0 0
          %807 = vmatpush1.bf16.msra.mxu0 0
          %808 = vmatprep.subr.bf16.mxu0 0
          %809 = vmatpush1.bf16.msra.mxu0 0
          %810 = vmatprep.subr.bf16.mxu0 0
          %811 = vmatpush1.bf16.msra.mxu0 0
          %812 = vmatprep.subr.bf16.mxu0 0
          %813 = vmatpush1.bf16.msra.mxu0 0
          %814 = vmatprep.subr.bf16.mxu0 0
          %815 = vmatpush1.bf16.msra.mxu0 0
          %816 = vmatprep.subr.bf16.mxu0 0
          %817 = vmatpush1.bf16.msra.mxu0 0
          %818 = vmatprep.subr.bf16.mxu0 0
          %819 = vmatpush1.bf16.msra.mxu0 0
          %820 = vmatprep.subr.bf16.mxu0 0
          %821 = vmatpush1.bf16.msra.mxu0 0
          %822 = vmatprep.subr.bf16.mxu0 0
          %823 = vmatpush1.bf16.msra.mxu0 0
          %824 = vmatprep.subr.bf16.mxu0 0
          %825 = vmatpush1.bf16.msra.mxu0 0
          %826 = vmatprep.mubr.bf16.mxu0 0
          %827 = vmatmul.mubr.bf16.gmra.mrb[0].mxu0 %v792
          %v828 = vpop.f32.mrb[0].mxu0
          %v829 = vadd.f32 %v777, %v828
          %v830 = vpop.f32.mrb[0].mxu0
          %v831 = vpop.f32.mrb[0].mxu0
          %v832 = vpop.f32.mrb[0].mxu0
          %833 = vdwg.mxu0
          %v834 = vld [vmem:[%s10] sm:$0xf]
          %v835 = vld [vmem:[%s10 + $0x4] sm:$0xf]
          %v836 = vld [vmem:[%s10 + $0x8] sm:$0xf]
          %v837 = vld [vmem:[%s10 + $0xc] sm:$0xf]
          %v838 = vld [vmem:[#allocation15] sm:$0x1]
          %v840 = vlaneseq
          %v841 = vshrl.u32 %v840, 7
          %v842 = vsub.s32 0, %v841
          %v843 = vrot.slane %v838, %v842
          %v849 = vunpack.c.l.b16 %v834
          %v850 = vunpack.c.l.b16 %v835
          %v851 = vunpack.c.l.b16 %v836
          %v852 = vunpack.c.l.b16 %v837
          %v853 = vpack.c.b16 %v850, %v849
          %v854 = vpack.c.b16 %v852, %v851
          %857 = vmatprep.subr.bf16.mxu0 0
          %858 = vmatpush1.bf16.msra.mxu0 %v853
          %859 = vmatprep.subr.bf16.mxu0 0
          %860 = vmatpush1.bf16.msra.mxu0 %v854
          %861 = vmatprep.subr.bf16.mxu0 0
          %862 = vmatpush1.bf16.msra.mxu0 0
          %863 = vmatprep.subr.bf16.mxu0 0
          %864 = vmatpush1.bf16.msra.mxu0 0
          %865 = vmatprep.subr.bf16.mxu0 0
          %866 = vmatpush1.bf16.msra.mxu0 0
          %867 = vmatprep.subr.bf16.mxu0 0
          %868 = vmatpush1.bf16.msra.mxu0 0
          %869 = vmatprep.subr.bf16.mxu0 0
          %870 = vmatpush1.bf16.msra.mxu0 0
          %871 = vmatprep.subr.bf16.mxu0 0
          %872 = vmatpush1.bf16.msra.mxu0 0
          %873 = vmatprep.subr.bf16.mxu0 0
          %874 = vmatpush1.bf16.msra.mxu0 0
          %875 = vmatprep.subr.bf16.mxu0 0
          %876 = vmatpush1.bf16.msra.mxu0 0
          %877 = vmatprep.subr.bf16.mxu0 0
          %878 = vmatpush1.bf16.msra.mxu0 0
          %879 = vmatprep.subr.bf16.mxu0 0
          %880 = vmatpush1.bf16.msra.mxu0 0
          %881 = vmatprep.subr.bf16.mxu0 0
          %882 = vmatpush1.bf16.msra.mxu0 0
          %883 = vmatprep.subr.bf16.mxu0 0
          %884 = vmatpush1.bf16.msra.mxu0 0
          %885 = vmatprep.subr.bf16.mxu0 0
          %886 = vmatpush1.bf16.msra.mxu0 0
          %887 = vmatprep.subr.bf16.mxu0 0
          %888 = vmatpush1.bf16.msra.mxu0 0
          %889 = vmatprep.mubr.bf16.mxu0 0
          %890 = vmatmul.mubr.bf16.gmra.mrb[0].mxu0 %v792
          %v891 = vpop.f32.mrb[0].mxu0
          %v892 = vadd.f32 %v843, %v891
          %v893 = vpop.f32.mrb[0].mxu0
          %v894 = vpop.f32.mrb[0].mxu0
          %v895 = vpop.f32.mrb[0].mxu0
          %896 = vdwg.mxu0
          %898 = vrot.lane.b32.xlu0 %v829, 120
          %v899 = vpop.permute.xlu0 %898
          %901 = vrot.lane.b32.xlu0 %v829, 112
          %v902 = vpop.permute.xlu0 %901
          %904 = vrot.lane.b32.xlu0 %v829, 104
          %v905 = vpop.permute.xlu0 %904
          %v907 = vcombine.low %v829, %v902
          %v908 = vcombine.high %v829, %v902
          %v910 = vunpack.c.l.s4 1983009808
          %v911 = vunpack.c.0.s8 %v910
          %v912 = vlaneseq
          %v913 = vshrl.u32 %v912, 7
          %v914 = vsub.s32 %v911, %v913
          %v915 = vrot.slane %v907, %v914
          %v917 = vunpack.c.l.s4 1983009808
          %v918 = vunpack.c.0.s8 %v917
          %v919 = vlaneseq
          %v920 = vshrl.u32 %v919, 7
          %v921 = vsub.s32 %v918, %v920
          %v922 = vrot.slane %v908, %v921
          %v923 = vcombine.low %v899, %v905
          %v924 = vcombine.high %v899, %v905
          %v926 = vunpack.c.l.s4 1983009808
          %v927 = vunpack.c.0.s8 %v926
          %v928 = vlaneseq
          %v929 = vshrl.u32 %v928, 7
          %v930 = vsub.s32 %v927, %v929
          %v931 = vrot.slane %v923, %v930
          %v933 = vunpack.c.l.s4 1983009808
          %v934 = vunpack.c.0.s8 %v933
          %v935 = vlaneseq
          %v936 = vshrl.u32 %v935, 7
          %v937 = vsub.s32 %v934, %v936
          %v938 = vrot.slane %v924, %v937
          %v939 = vcombine.low %v915, %v931
          %v940 = vcombine.high %v915, %v931
          %v942 = vunpack.c.l.s4 1934713408
          %v943 = vunpack.c.0.s8 %v942
          %v944 = vlaneseq
          %v945 = vshrl.u32 %v944, 7
          %v946 = vsub.s32 %v943, %v945
          %v947 = vrot.slane %v939, %v946
          %v949 = vunpack.c.l.s4 1934713408
          %v950 = vunpack.c.0.s8 %v949
          %v951 = vlaneseq
          %v952 = vshrl.u32 %v951, 7
          %v953 = vsub.s32 %v950, %v952
          %v954 = vrot.slane %v940, %v953
          %v955 = vcombine.low %v922, %v938
          %v956 = vcombine.high %v922, %v938
          %v958 = vunpack.c.l.s4 1934713408
          %v959 = vunpack.c.0.s8 %v958
          %v960 = vlaneseq
          %v961 = vshrl.u32 %v960, 7
          %v962 = vsub.s32 %v959, %v961
          %v963 = vrot.slane %v955, %v962
          %v965 = vunpack.c.l.s4 1934713408
          %v966 = vunpack.c.0.s8 %v965
          %v967 = vlaneseq
          %v968 = vshrl.u32 %v967, 7
          %v969 = vsub.s32 %v966, %v968
          %v970 = vrot.slane %v956, %v969
          %v971 = vcombine.high %v947, 0.0
          %v972 = vcombine.high %v954, 0.0
          %v973 = vcombine.high %v963, 0.0
          %v974 = vcombine.high %v970, 0.0
          %v975 = vcombine.low %v947, %v954
          %v977 = vunpack.c.l.s4 1983009808
          %v978 = vunpack.c.0.s8 %v977
          %v979 = vlaneseq
          %v980 = vshrl.u32 %v979, 7
          %v981 = vsub.s32 %v978, %v980
          %v982 = vrot.slane %v975, %v981
          %v983 = vcombine.low %v971, %v972
          %v985 = vunpack.c.l.s4 1983009808
          %v986 = vunpack.c.0.s8 %v985
          %v987 = vlaneseq
          %v988 = vshrl.u32 %v987, 7
          %v989 = vsub.s32 %v986, %v988
          %v990 = vrot.slane %v983, %v989
          %v991 = vcombine.low %v963, %v970
          %v993 = vunpack.c.l.s4 1983009808
          %v994 = vunpack.c.0.s8 %v993
          %v995 = vlaneseq
          %v996 = vshrl.u32 %v995, 7
          %v997 = vsub.s32 %v994, %v996
          %v998 = vrot.slane %v991, %v997
          %v999 = vcombine.low %v973, %v974
          %v1001 = vunpack.c.l.s4 1983009808
          %v1002 = vunpack.c.0.s8 %v1001
          %v1003 = vlaneseq
          %v1004 = vshrl.u32 %v1003, 7
          %v1005 = vsub.s32 %v1002, %v1004
          %v1006 = vrot.slane %v999, %v1005
          %v1007 = vcombine.low %v982, %v990
          %v1008 = vcombine.high %v982, %v990
          %v1010 = vunpack.c.l.s4 1934713408
          %v1011 = vunpack.c.0.s8 %v1010
          %v1012 = vlaneseq
          %v1013 = vshrl.u32 %v1012, 7
          %v1014 = vsub.s32 %v1011, %v1013
          %v1015 = vrot.slane %v1007, %v1014
          %v1017 = vunpack.c.l.s4 1934713408
          %v1018 = vunpack.c.0.s8 %v1017
          %v1019 = vlaneseq
          %v1020 = vshrl.u32 %v1019, 7
          %v1021 = vsub.s32 %v1018, %v1020
          %v1022 = vrot.slane %v1008, %v1021
          %v1023 = vcombine.low %v998, %v1006
          %v1024 = vcombine.high %v998, %v1006
          %v1026 = vunpack.c.l.s4 1934713408
          %v1027 = vunpack.c.0.s8 %v1026
          %v1028 = vlaneseq
          %v1029 = vshrl.u32 %v1028, 7
          %v1030 = vsub.s32 %v1027, %v1029
          %v1031 = vrot.slane %v1023, %v1030
          %v1033 = vunpack.c.l.s4 1934713408
          %v1034 = vunpack.c.0.s8 %v1033
          %v1035 = vlaneseq
          %v1036 = vshrl.u32 %v1035, 7
          %v1037 = vsub.s32 %v1034, %v1036
          %v1038 = vrot.slane %v1024, %v1037
          %v1039 = vcombine.low %v1015, %v1031
          %v1040 = vcombine.high %v1015, %v1031
          %v1041 = vcombine.low %v1022, %v1038
          %v1042 = vcombine.high %v1022, %v1038
          %v1043 = vpack.c.bf16 %v1039, %v1039
          %v1044 = vpack.c.bf16 %v1040, %v1040
          %v1045 = vpack.c.bf16 %v1041, %v1041
          %v1046 = vpack.c.bf16 %v1042, %v1042
          %vm1047 = vcmask 60416
          %1048 = vst.msk [vmem:[#allocation2] sm:$0xf] %vm1047, %v1043
          %1049 = vst.msk [vmem:[#allocation2 + $0x4] sm:$0xf] %vm1047, %v1044
          %1050 = vst.msk [vmem:[#allocation2 + $0x8] sm:$0xf] %vm1047, %v1045
          %1051 = vst.msk [vmem:[#allocation2 + $0xc] sm:$0xf] %vm1047, %v1046
          %1053 = vrot.lane.b32.xlu0 %v892, 120
          %v1054 = vpop.permute.xlu0 %1053
          %1056 = vrot.lane.b32.xlu0 %v892, 112
          %v1057 = vpop.permute.xlu0 %1056
          %1059 = vrot.lane.b32.xlu0 %v892, 104
          %v1060 = vpop.permute.xlu0 %1059
          %v1062 = vcombine.low %v892, %v1057
          %v1063 = vcombine.high %v892, %v1057
          %v1065 = vunpack.c.l.s4 1983009808
          %v1066 = vunpack.c.0.s8 %v1065
          %v1067 = vlaneseq
          %v1068 = vshrl.u32 %v1067, 7
          %v1069 = vsub.s32 %v1066, %v1068
          %v1070 = vrot.slane %v1062, %v1069
          %v1072 = vunpack.c.l.s4 1983009808
          %v1073 = vunpack.c.0.s8 %v1072
          %v1074 = vlaneseq
          %v1075 = vshrl.u32 %v1074, 7
          %v1076 = vsub.s32 %v1073, %v1075
          %v1077 = vrot.slane %v1063, %v1076
          %v1078 = vcombine.low %v1054, %v1060
          %v1079 = vcombine.high %v1054, %v1060
          %v1081 = vunpack.c.l.s4 1983009808
          %v1082 = vunpack.c.0.s8 %v1081
          %v1083 = vlaneseq
          %v1084 = vshrl.u32 %v1083, 7
          %v1085 = vsub.s32 %v1082, %v1084
          %v1086 = vrot.slane %v1078, %v1085
          %v1088 = vunpack.c.l.s4 1983009808
          %v1089 = vunpack.c.0.s8 %v1088
          %v1090 = vlaneseq
          %v1091 = vshrl.u32 %v1090, 7
          %v1092 = vsub.s32 %v1089, %v1091
          %v1093 = vrot.slane %v1079, %v1092
          %v1094 = vcombine.low %v1070, %v1086
          %v1095 = vcombine.high %v1070, %v1086
          %v1097 = vunpack.c.l.s4 1934713408
          %v1098 = vunpack.c.0.s8 %v1097
          %v1099 = vlaneseq
          %v1100 = vshrl.u32 %v1099, 7
          %v1101 = vsub.s32 %v1098, %v1100
          %v1102 = vrot.slane %v1094, %v1101
          %v1104 = vunpack.c.l.s4 1934713408
          %v1105 = vunpack.c.0.s8 %v1104
          %v1106 = vlaneseq
          %v1107 = vshrl.u32 %v1106, 7
          %v1108 = vsub.s32 %v1105, %v1107
          %v1109 = vrot.slane %v1095, %v1108
          %v1110 = vcombine.low %v1077, %v1093
          %v1111 = vcombine.high %v1077, %v1093
          %v1113 = vunpack.c.l.s4 1934713408
          %v1114 = vunpack.c.0.s8 %v1113
          %v1115 = vlaneseq
          %v1116 = vshrl.u32 %v1115, 7
          %v1117 = vsub.s32 %v1114, %v1116
          %v1118 = vrot.slane %v1110, %v1117
          %v1120 = vunpack.c.l.s4 1934713408
          %v1121 = vunpack.c.0.s8 %v1120
          %v1122 = vlaneseq
          %v1123 = vshrl.u32 %v1122, 7
          %v1124 = vsub.s32 %v1121, %v1123
          %v1125 = vrot.slane %v1111, %v1124
          %v1126 = vcombine.high %v1102, 0.0
          %v1127 = vcombine.high %v1109, 0.0
          %v1128 = vcombine.high %v1118, 0.0
          %v1129 = vcombine.high %v1125, 0.0
          %v1130 = vcombine.low %v1102, %v1109
          %v1132 = vunpack.c.l.s4 1983009808
          %v1133 = vunpack.c.0.s8 %v1132
          %v1134 = vlaneseq
          %v1135 = vshrl.u32 %v1134, 7
          %v1136 = vsub.s32 %v1133, %v1135
          %v1137 = vrot.slane %v1130, %v1136
          %v1138 = vcombine.low %v1126, %v1127
          %v1140 = vunpack.c.l.s4 1983009808
          %v1141 = vunpack.c.0.s8 %v1140
          %v1142 = vlaneseq
          %v1143 = vshrl.u32 %v1142, 7
          %v1144 = vsub.s32 %v1141, %v1143
          %v1145 = vrot.slane %v1138, %v1144
          %v1146 = vcombine.low %v1118, %v1125
          %v1148 = vunpack.c.l.s4 1983009808
          %v1149 = vunpack.c.0.s8 %v1148
          %v1150 = vlaneseq
          %v1151 = vshrl.u32 %v1150, 7
          %v1152 = vsub.s32 %v1149, %v1151
          %v1153 = vrot.slane %v1146, %v1152
          %v1154 = vcombine.low %v1128, %v1129
          %v1156 = vunpack.c.l.s4 1983009808
          %v1157 = vunpack.c.0.s8 %v1156
          %v1158 = vlaneseq
          %v1159 = vshrl.u32 %v1158, 7
          %v1160 = vsub.s32 %v1157, %v1159
          %v1161 = vrot.slane %v1154, %v1160
          %v1162 = vcombine.low %v1137, %v1145
          %v1163 = vcombine.high %v1137, %v1145
          %v1165 = vunpack.c.l.s4 1934713408
          %v1166 = vunpack.c.0.s8 %v1165
          %v1167 = vlaneseq
          %v1168 = vshrl.u32 %v1167, 7
          %v1169 = vsub.s32 %v1166, %v1168
          %v1170 = vrot.slane %v1162, %v1169
          %v1172 = vunpack.c.l.s4 1934713408
          %v1173 = vunpack.c.0.s8 %v1172
          %v1174 = vlaneseq
          %v1175 = vshrl.u32 %v1174, 7
          %v1176 = vsub.s32 %v1173, %v1175
          %v1177 = vrot.slane %v1163, %v1176
          %v1178 = vcombine.low %v1153, %v1161
          %v1179 = vcombine.high %v1153, %v1161
          %v1181 = vunpack.c.l.s4 1934713408
          %v1182 = vunpack.c.0.s8 %v1181
          %v1183 = vlaneseq
          %v1184 = vshrl.u32 %v1183, 7
          %v1185 = vsub.s32 %v1182, %v1184
          %v1186 = vrot.slane %v1178, %v1185
          %v1188 = vunpack.c.l.s4 1934713408
          %v1189 = vunpack.c.0.s8 %v1188
          %v1190 = vlaneseq
          %v1191 = vshrl.u32 %v1190, 7
          %v1192 = vsub.s32 %v1189, %v1191
          %v1193 = vrot.slane %v1179, %v1192
          %v1194 = vcombine.low %v1170, %v1186
          %v1195 = vcombine.high %v1170, %v1186
          %v1196 = vcombine.low %v1177, %v1193
          %v1197 = vcombine.high %v1177, %v1193
          %v1198 = vpack.c.bf16 %v1194, %v1194
          %v1199 = vpack.c.bf16 %v1195, %v1195
          %v1200 = vpack.c.bf16 %v1196, %v1196
          %v1201 = vpack.c.bf16 %v1197, %v1197
          %1202 = vst.msk [vmem:[#allocation3] sm:$0xf] %vm1047, %v1198
          %1203 = vst.msk [vmem:[#allocation3 + $0x4] sm:$0xf] %vm1047, %v1199
          %1204 = vst.msk [vmem:[#allocation3 + $0x8] sm:$0xf] %vm1047, %v1200
          %1205 = vst.msk [vmem:[#allocation3 + $0xc] sm:$0xf] %vm1047, %v1201
        $region132: #{tpu_custom_call.1} parent=91 // pred_fallthru
          _
        %v1206 = vld [vmem:[%s729] sm:$0xff]
        %vm1207 = vcmask 261120
        %v1208 = vsel %vm1207, %v1206, 0.0
        %1209 = vadd.xlane.f32.xlu0 %v1208
        %v1210 = vpop.xlane.xlu0 %1209
        %v1211 = vrcp.pop 32.0
        %v1212 = vmul.f32 %v1210, %v1211
        %v1213 = vsub.f32 %v1206, %v1212
        %v1214 = vmul.f32 %v1213, %v1213
        %v1215 = vsel %vm1207, %v1214, 0.0
        %1216 = vadd.xlane.f32.xlu0 %v1215
        %v1217 = vpop.xlane.xlu0 %1216
        %v1218 = vmul.f32 %v1217, %v1211
        %v1219 = vadd.f32 %v1218, 1e-05
        %v1220 = vrsqrt.pop %v1219
        %v1221 = vmul.f32 %v1213, %v1220
        %v1223 = vlaneseq
        %v1224 = vshrl.u32 %v1223, 7
        %v1225 = vsub.s32 0, %v1224
        %v1226 = vrot.slane %v731, %v1225
        %v1228 = vmul.f32 %v1221, %v1226
        %v1230 = vlaneseq
        %v1231 = vshrl.u32 %v1230, 7
        %v1232 = vsub.s32 0, %v1231
        %v1233 = vrot.slane %v732, %v1232
        %v1235 = vadd.f32 %v1228, %v1233
        %v1236 = vpack.c.bf16 %v1235, %v1235
        %v1237 = vld [vmem:[%s6] sm:$0xf]
        %v1238 = vld [vmem:[%s6 + $0x4] sm:$0xf]
        %v1239 = vld [vmem:[%s6 + $0x8] sm:$0xf]
        %v1240 = vld [vmem:[%s6 + $0xc] sm:$0xf]
        %v1241 = vld [vmem:[#allocation10] sm:$0x1]
        %v1243 = vlaneseq
        %v1244 = vshrl.u32 %v1243, 7
        %v1245 = vsub.s32 0, %v1244
        %v1246 = vrot.slane %v1241, %v1245
        %v1252 = vunpack.c.l.b16 %v1237
        %v1253 = vunpack.c.l.b16 %v1238
        %v1254 = vunpack.c.l.b16 %v1239
        %v1255 = vunpack.c.l.b16 %v1240
        %v1256 = vpack.c.b16 %v1253, %v1252
        %v1257 = vpack.c.b16 %v1255, %v1254
        %v1261 = vsel %vm1207, %v1236, 0
        %1263 = vmatprep.subr.bf16.mxu0 0
        %1264 = vmatpush1.bf16.msra.mxu0 %v1256
        %1265 = vmatprep.subr.bf16.mxu0 0
        %1266 = vmatpush1.bf16.msra.mxu0 %v1257
        %1267 = vmatprep.subr.bf16.mxu0 0
        %1268 = vmatpush1.bf16.msra.mxu0 0
        %1269 = vmatprep.subr.bf16.mxu0 0
        %1270 = vmatpush1.bf16.msra.mxu0 0
        %1271 = vmatprep.subr.bf16.mxu0 0
        %1272 = vmatpush1.bf16.msra.mxu0 0
        %1273 = vmatprep.subr.bf16.mxu0 0
        %1274 = vmatpush1.bf16.msra.mxu0 0
        %1275 = vmatprep.subr.bf16.mxu0 0
        %1276 = vmatpush1.bf16.msra.mxu0 0
        %1277 = vmatprep.subr.bf16.mxu0 0
        %1278 = vmatpush1.bf16.msra.mxu0 0
        %1279 = vmatprep.subr.bf16.mxu0 0
        %1280 = vmatpush1.bf16.msra.mxu0 0
        %1281 = vmatprep.subr.bf16.mxu0 0
        %1282 = vmatpush1.bf16.msra.mxu0 0
        %1283 = vmatprep.subr.bf16.mxu0 0
        %1284 = vmatpush1.bf16.msra.mxu0 0
        %1285 = vmatprep.subr.bf16.mxu0 0
        %1286 = vmatpush1.bf16.msra.mxu0 0
        %1287 = vmatprep.subr.bf16.mxu0 0
        %1288 = vmatpush1.bf16.msra.mxu0 0
        %1289 = vmatprep.subr.bf16.mxu0 0
        %1290 = vmatpush1.bf16.msra.mxu0 0
        %1291 = vmatprep.subr.bf16.mxu0 0
        %1292 = vmatpush1.bf16.msra.mxu0 0
        %1293 = vmatprep.subr.bf16.mxu0 0
        %1294 = vmatpush1.bf16.msra.mxu0 0
        %1295 = vmatprep.mubr.bf16.mxu0 0
        %1296 = vmatmul.mubr.bf16.gmra.mrb[0].mxu0 %v1261
        %v1297 = vpop.f32.mrb[0].mxu0
        %v1298 = vadd.f32 %v1246, %v1297
        %v1299 = vpop.f32.mrb[0].mxu0
        %v1300 = vpop.f32.mrb[0].mxu0
        %v1301 = vpop.f32.mrb[0].mxu0
        %1302 = vdwg.mxu0
        %1304 = vrot.lane.b32.xlu0 %v1298, 120
        %v1305 = vpop.permute.xlu0 %1304
        %1307 = vrot.lane.b32.xlu0 %v1298, 112
        %v1308 = vpop.permute.xlu0 %1307
        %1310 = vrot.lane.b32.xlu0 %v1298, 104
        %v1311 = vpop.permute.xlu0 %1310
        %v1313 = vcombine.low %v1298, %v1308
        %v1314 = vcombine.high %v1298, %v1308
        %v1316 = vunpack.c.l.s4 1983009808
        %v1317 = vunpack.c.0.s8 %v1316
        %v1318 = vlaneseq
        %v1319 = vshrl.u32 %v1318, 7
        %v1320 = vsub.s32 %v1317, %v1319
        %v1321 = vrot.slane %v1313, %v1320
        %v1323 = vunpack.c.l.s4 1983009808
        %v1324 = vunpack.c.0.s8 %v1323
        %v1325 = vlaneseq
        %v1326 = vshrl.u32 %v1325, 7
        %v1327 = vsub.s32 %v1324, %v1326
        %v1328 = vrot.slane %v1314, %v1327
        %v1329 = vcombine.low %v1305, %v1311
        %v1330 = vcombine.high %v1305, %v1311
        %v1332 = vunpack.c.l.s4 1983009808
        %v1333 = vunpack.c.0.s8 %v1332
        %v1334 = vlaneseq
        %v1335 = vshrl.u32 %v1334, 7
        %v1336 = vsub.s32 %v1333, %v1335
        %v1337 = vrot.slane %v1329, %v1336
        %v1339 = vunpack.c.l.s4 1983009808
        %v1340 = vunpack.c.0.s8 %v1339
        %v1341 = vlaneseq
        %v1342 = vshrl.u32 %v1341, 7
        %v1343 = vsub.s32 %v1340, %v1342
        %v1344 = vrot.slane %v1330, %v1343
        %v1345 = vcombine.low %v1321, %v1337
        %v1346 = vcombine.high %v1321, %v1337
        %v1348 = vunpack.c.l.s4 1934713408
        %v1349 = vunpack.c.0.s8 %v1348
        %v1350 = vlaneseq
        %v1351 = vshrl.u32 %v1350, 7
        %v1352 = vsub.s32 %v1349, %v1351
        %v1353 = vrot.slane %v1345, %v1352
        %v1355 = vunpack.c.l.s4 1934713408
        %v1356 = vunpack.c.0.s8 %v1355
        %v1357 = vlaneseq
        %v1358 = vshrl.u32 %v1357, 7
        %v1359 = vsub.s32 %v1356, %v1358
        %v1360 = vrot.slane %v1346, %v1359
        %v1361 = vcombine.low %v1328, %v1344
        %v1362 = vcombine.high %v1328, %v1344
        %v1364 = vunpack.c.l.s4 1934713408
        %v1365 = vunpack.c.0.s8 %v1364
        %v1366 = vlaneseq
        %v1367 = vshrl.u32 %v1366, 7
        %v1368 = vsub.s32 %v1365, %v1367
        %v1369 = vrot.slane %v1361, %v1368
        %v1371 = vunpack.c.l.s4 1934713408
        %v1372 = vunpack.c.0.s8 %v1371
        %v1373 = vlaneseq
        %v1374 = vshrl.u32 %v1373, 7
        %v1375 = vsub.s32 %v1372, %v1374
        %v1376 = vrot.slane %v1362, %v1375
        %v1377 = vcombine.high %v1353, 0.0
        %v1378 = vcombine.high %v1360, 0.0
        %v1379 = vcombine.high %v1369, 0.0
        %v1380 = vcombine.high %v1376, 0.0
        %v1381 = vcombine.low %v1353, %v1360
        %v1383 = vunpack.c.l.s4 1983009808
        %v1384 = vunpack.c.0.s8 %v1383
        %v1385 = vlaneseq
        %v1386 = vshrl.u32 %v1385, 7
        %v1387 = vsub.s32 %v1384, %v1386
        %v1388 = vrot.slane %v1381, %v1387
        %v1389 = vcombine.low %v1377, %v1378
        %v1391 = vunpack.c.l.s4 1983009808
        %v1392 = vunpack.c.0.s8 %v1391
        %v1393 = vlaneseq
        %v1394 = vshrl.u32 %v1393, 7
        %v1395 = vsub.s32 %v1392, %v1394
        %v1396 = vrot.slane %v1389, %v1395
        %v1397 = vcombine.low %v1369, %v1376
        %v1399 = vunpack.c.l.s4 1983009808
        %v1400 = vunpack.c.0.s8 %v1399
        %v1401 = vlaneseq
        %v1402 = vshrl.u32 %v1401, 7
        %v1403 = vsub.s32 %v1400, %v1402
        %v1404 = vrot.slane %v1397, %v1403
        %v1405 = vcombine.low %v1379, %v1380
        %v1407 = vunpack.c.l.s4 1983009808
        %v1408 = vunpack.c.0.s8 %v1407
        %v1409 = vlaneseq
        %v1410 = vshrl.u32 %v1409, 7
        %v1411 = vsub.s32 %v1408, %v1410
        %v1412 = vrot.slane %v1405, %v1411
        %v1413 = vcombine.low %v1388, %v1396
        %v1414 = vcombine.high %v1388, %v1396
        %v1416 = vunpack.c.l.s4 1934713408
        %v1417 = vunpack.c.0.s8 %v1416
        %v1418 = vlaneseq
        %v1419 = vshrl.u32 %v1418, 7
        %v1420 = vsub.s32 %v1417, %v1419
        %v1421 = vrot.slane %v1413, %v1420
        %v1423 = vunpack.c.l.s4 1934713408
        %v1424 = vunpack.c.0.s8 %v1423
        %v1425 = vlaneseq
        %v1426 = vshrl.u32 %v1425, 7
        %v1427 = vsub.s32 %v1424, %v1426
        %v1428 = vrot.slane %v1414, %v1427
        %v1429 = vcombine.low %v1404, %v1412
        %v1430 = vcombine.high %v1404, %v1412
        %v1432 = vunpack.c.l.s4 1934713408
        %v1433 = vunpack.c.0.s8 %v1432
        %v1434 = vlaneseq
        %v1435 = vshrl.u32 %v1434, 7
        %v1436 = vsub.s32 %v1433, %v1435
        %v1437 = vrot.slane %v1429, %v1436
        %v1439 = vunpack.c.l.s4 1934713408
        %v1440 = vunpack.c.0.s8 %v1439
        %v1441 = vlaneseq
        %v1442 = vshrl.u32 %v1441, 7
        %v1443 = vsub.s32 %v1440, %v1442
        %v1444 = vrot.slane %v1430, %v1443
        %v1445 = vcombine.low %v1421, %v1437
        %v1446 = vcombine.high %v1421, %v1437
        %v1447 = vcombine.low %v1428, %v1444
        %v1448 = vcombine.high %v1428, %v1444
        %v1449 = vpack.c.bf16 %v1445, %v1445
        %v1450 = vpack.c.bf16 %v1446, %v1446
        %v1451 = vpack.c.bf16 %v1447, %v1447
        %v1452 = vpack.c.bf16 %v1448, %v1448
        %v1453 = vld [vmem:[#allocation2] sm:$0xf]
        %v1454 = vld [vmem:[#allocation2 + $0x4] sm:$0xf]
        %v1455 = vld [vmem:[#allocation2 + $0x8] sm:$0xf]
        %v1456 = vld [vmem:[#allocation2 + $0xc] sm:$0xf]
        %vm1457 = vcmask 64512
        %v1459 = vsel %vm1457, %v1449, 0
        %v1462 = vsel %vm1457, %v1453, 0
        %1464 = vmatprep.subr.bf16.mxu0 0
        %1465 = vmatpush1.bf16.xpose.msra.mxu0 %v1462
        %1466 = vmatprep.subr.bf16.mxu0 0
        %1467 = vmatpush1.bf16.xpose.msra.mxu0 0
        %1468 = vmatprep.subr.bf16.mxu0 0
        %1469 = vmatpush1.bf16.xpose.msra.mxu0 0
        %1470 = vmatprep.subr.bf16.mxu0 0
        %1471 = vmatpush1.bf16.xpose.msra.mxu0 0
        %1472 = vmatprep.subr.bf16.mxu0 0
        %1473 = vmatpush1.bf16.xpose.msra.mxu0 0
        %1474 = vmatprep.subr.bf16.mxu0 0
        %1475 = vmatpush1.bf16.xpose.msra.mxu0 0
        %1476 = vmatprep.subr.bf16.mxu0 0
        %1477 = vmatpush1.bf16.xpose.msra.mxu0 0
        %1478 = vmatprep.subr.bf16.mxu0 0
        %1479 = vmatpush1.bf16.xpose.msra.mxu0 0
        %1480 = vmatprep.subr.bf16.mxu0 0
        %1481 = vmatpush1.bf16.xpose.msra.mxu0 0
        %1482 = vmatprep.subr.bf16.mxu0 0
        %1483 = vmatpush1.bf16.xpose.msra.mxu0 0
        %1484 = vmatprep.subr.bf16.mxu0 0
        %1485 = vmatpush1.bf16.xpose.msra.mxu0 0
        %1486 = vmatprep.subr.bf16.mxu0 0
        %1487 = vmatpush1.bf16.xpose.msra.mxu0 0
        %1488 = vmatprep.subr.bf16.mxu0 0
        %1489 = vmatpush1.bf16.xpose.msra.mxu0 0
        %1490 = vmatprep.subr.bf16.mxu0 0
        %1491 = vmatpush1.bf16.xpose.msra.mxu0 0
        %1492 = vmatprep.subr.bf16.mxu0 0
        %1493 = vmatpush1.bf16.xpose.msra.mxu0 0
        %1494 = vmatprep.subr.bf16.mxu0 0
        %1495 = vmatpush1.bf16.xpose.msra.mxu0 0
        %1496 = vmatprep.mubr.bf16.mxu0 0
        %1497 = vmatmul.mubr.bf16.gmra.mrb[0].mxu0 %v1459
        %v1498 = vpop.f32.mrb[0].mxu0
        %v1499 = vadd.f32 0.0, %v1498
        %v1500 = vpop.f32.mrb[0].mxu0
        %v1501 = vpop.f32.mrb[0].mxu0
        %v1502 = vpop.f32.mrb[0].mxu0
        %1503 = vdwg.mxu0
        %v1505 = vsel %vm1457, %v1450, 0
        %v1508 = vsel %vm1457, %v1454, 0
        %1510 = vmatprep.subr.bf16.mxu0 0
        %1511 = vmatpush1.bf16.xpose.msra.mxu0 %v1508
        %1512 = vmatprep.subr.bf16.mxu0 0
        %1513 = vmatpush1.bf16.xpose.msra.mxu0 0
        %1514 = vmatprep.subr.bf16.mxu0 0
        %1515 = vmatpush1.bf16.xpose.msra.mxu0 0
        %1516 = vmatprep.subr.bf16.mxu0 0
        %1517 = vmatpush1.bf16.xpose.msra.mxu0 0
        %1518 = vmatprep.subr.bf16.mxu0 0
        %1519 = vmatpush1.bf16.xpose.msra.mxu0 0
        %1520 = vmatprep.subr.bf16.mxu0 0
        %1521 = vmatpush1.bf16.xpose.msra.mxu0 0
        %1522 = vmatprep.subr.bf16.mxu0 0
        %1523 = vmatpush1.bf16.xpose.msra.mxu0 0
        %1524 = vmatprep.subr.bf16.mxu0 0
        %1525 = vmatpush1.bf16.xpose.msra.mxu0 0
        %1526 = vmatprep.subr.bf16.mxu0 0
        %1527 = vmatpush1.bf16.xpose.msra.mxu0 0
        %1528 = vmatprep.subr.bf16.mxu0 0
        %1529 = vmatpush1.bf16.xpose.msra.mxu0 0
        %1530 = vmatprep.subr.bf16.mxu0 0
        %1531 = vmatpush1.bf16.xpose.msra.mxu0 0
        %1532 = vmatprep.subr.bf16.mxu0 0
        %1533 = vmatpush1.bf16.xpose.msra.mxu0 0
        %1534 = vmatprep.subr.bf16.mxu0 0
        %1535 = vmatpush1.bf16.xpose.msra.mxu0 0
        %1536 = vmatprep.subr.bf16.mxu0 0
        %1537 = vmatpush1.bf16.xpose.msra.mxu0 0
        %1538 = vmatprep.subr.bf16.mxu0 0
        %1539 = vmatpush1.bf16.xpose.msra.mxu0 0
        %1540 = vmatprep.subr.bf16.mxu0 0
        %1541 = vmatpush1.bf16.xpose.msra.mxu0 0
        %1542 = vmatprep.mubr.bf16.mxu0 0
        %1543 = vmatmul.mubr.bf16.gmra.mrb[0].mxu0 %v1505
        %v1544 = vpop.f32.mrb[0].mxu0
        %v1545 = vadd.f32 0.0, %v1544
        %v1546 = vpop.f32.mrb[0].mxu0
        %v1547 = vpop.f32.mrb[0].mxu0
        %v1548 = vpop.f32.mrb[0].mxu0
        %1549 = vdwg.mxu0
        %v1551 = vsel %vm1457, %v1451, 0
        %v1554 = vsel %vm1457, %v1455, 0
        %1556 = vmatprep.subr.bf16.mxu0 0
        %1557 = vmatpush1.bf16.xpose.msra.mxu0 %v1554
        %1558 = vmatprep.subr.bf16.mxu0 0
        %1559 = vmatpush1.bf16.xpose.msra.mxu0 0
        %1560 = vmatprep.subr.bf16.mxu0 0
        %1561 = vmatpush1.bf16.xpose.msra.mxu0 0
        %1562 = vmatprep.subr.bf16.mxu0 0
        %1563 = vmatpush1.bf16.xpose.msra.mxu0 0
        %1564 = vmatprep.subr.bf16.mxu0 0
        %1565 = vmatpush1.bf16.xpose.msra.mxu0 0
        %1566 = vmatprep.subr.bf16.mxu0 0
        %1567 = vmatpush1.bf16.xpose.msra.mxu0 0
        %1568 = vmatprep.subr.bf16.mxu0 0
        %1569 = vmatpush1.bf16.xpose.msra.mxu0 0
        %1570 = vmatprep.subr.bf16.mxu0 0
        %1571 = vmatpush1.bf16.xpose.msra.mxu0 0
        %1572 = vmatprep.subr.bf16.mxu0 0
        %1573 = vmatpush1.bf16.xpose.msra.mxu0 0
        %1574 = vmatprep.subr.bf16.mxu0 0
        %1575 = vmatpush1.bf16.xpose.msra.mxu0 0
        %1576 = vmatprep.subr.bf16.mxu0 0
        %1577 = vmatpush1.bf16.xpose.msra.mxu0 0
        %1578 = vmatprep.subr.bf16.mxu0 0
        %1579 = vmatpush1.bf16.xpose.msra.mxu0 0
        %1580 = vmatprep.subr.bf16.mxu0 0
        %1581 = vmatpush1.bf16.xpose.msra.mxu0 0
        %1582 = vmatprep.subr.bf16.mxu0 0
        %1583 = vmatpush1.bf16.xpose.msra.mxu0 0
        %1584 = vmatprep.subr.bf16.mxu0 0
        %1585 = vmatpush1.bf16.xpose.msra.mxu0 0
        %1586 = vmatprep.subr.bf16.mxu0 0
        %1587 = vmatpush1.bf16.xpose.msra.mxu0 0
        %1588 = vmatprep.mubr.bf16.mxu0 0
        %1589 = vmatmul.mubr.bf16.gmra.mrb[0].mxu0 %v1551
        %v1590 = vpop.f32.mrb[0].mxu0
        %v1591 = vadd.f32 0.0, %v1590
        %v1592 = vpop.f32.mrb[0].mxu0
        %v1593 = vpop.f32.mrb[0].mxu0
        %v1594 = vpop.f32.mrb[0].mxu0
        %1595 = vdwg.mxu0
        %v1597 = vsel %vm1457, %v1452, 0
        %v1600 = vsel %vm1457, %v1456, 0
        %1602 = vmatprep.subr.bf16.mxu0 0
        %1603 = vmatpush1.bf16.xpose.msra.mxu0 %v1600
        %1604 = vmatprep.subr.bf16.mxu0 0
        %1605 = vmatpush1.bf16.xpose.msra.mxu0 0
        %1606 = vmatprep.subr.bf16.mxu0 0
        %1607 = vmatpush1.bf16.xpose.msra.mxu0 0
        %1608 = vmatprep.subr.bf16.mxu0 0
        %1609 = vmatpush1.bf16.xpose.msra.mxu0 0
        %1610 = vmatprep.subr.bf16.mxu0 0
        %1611 = vmatpush1.bf16.xpose.msra.mxu0 0
        %1612 = vmatprep.subr.bf16.mxu0 0
        %1613 = vmatpush1.bf16.xpose.msra.mxu0 0
        %1614 = vmatprep.subr.bf16.mxu0 0
        %1615 = vmatpush1.bf16.xpose.msra.mxu0 0
        %1616 = vmatprep.subr.bf16.mxu0 0
        %1617 = vmatpush1.bf16.xpose.msra.mxu0 0
        %1618 = vmatprep.subr.bf16.mxu0 0
        %1619 = vmatpush1.bf16.xpose.msra.mxu0 0
        %1620 = vmatprep.subr.bf16.mxu0 0
        %1621 = vmatpush1.bf16.xpose.msra.mxu0 0
        %1622 = vmatprep.subr.bf16.mxu0 0
        %1623 = vmatpush1.bf16.xpose.msra.mxu0 0
        %1624 = vmatprep.subr.bf16.mxu0 0
        %1625 = vmatpush1.bf16.xpose.msra.mxu0 0
        %1626 = vmatprep.subr.bf16.mxu0 0
        %1627 = vmatpush1.bf16.xpose.msra.mxu0 0
        %1628 = vmatprep.subr.bf16.mxu0 0
        %1629 = vmatpush1.bf16.xpose.msra.mxu0 0
        %1630 = vmatprep.subr.bf16.mxu0 0
        %1631 = vmatpush1.bf16.xpose.msra.mxu0 0
        %1632 = vmatprep.subr.bf16.mxu0 0
        %1633 = vmatpush1.bf16.xpose.msra.mxu0 0
        %1634 = vmatprep.mubr.bf16.mxu0 0
        %1635 = vmatmul.mubr.bf16.gmra.mrb[0].mxu0 %v1597
        %v1636 = vpop.f32.mrb[0].mxu0
        %v1637 = vadd.f32 0.0, %v1636
        %v1638 = vpop.f32.mrb[0].mxu0
        %v1639 = vpop.f32.mrb[0].mxu0
        %v1640 = vpop.f32.mrb[0].mxu0
        %1641 = vdwg.mxu0
        %v1642 = vmul.f32 %v1499, 0.35355338
        %v1643 = vmul.f32 %v1545, 0.35355338
        %v1644 = vmul.f32 %v1591, 0.35355338
        %v1645 = vmul.f32 %v1637, 0.35355338
        %v1646 = vsel %vm1457, %v1642, -inf
        %1647 = vmax.xlane.f32.xlu0 %v1646
        %v1648 = vpop.xlane.xlu0 %1647
        %v1649 = vsel %vm1457, %v1643, -inf
        %1650 = vmax.xlane.f32.xlu0 %v1649
        %v1651 = vpop.xlane.xlu0 %1650
        %v1652 = vsel %vm1457, %v1644, -inf
        %1653 = vmax.xlane.f32.xlu0 %v1652
        %v1654 = vpop.xlane.xlu0 %1653
        %v1655 = vsel %vm1457, %v1645, -inf
        %1656 = vmax.xlane.f32.xlu0 %v1655
        %v1657 = vpop.xlane.xlu0 %1656
        %v1658 = vsub.f32 %v1642, %v1648
        %v1659 = vsub.f32 %v1643, %v1651
        %v1660 = vsub.f32 %v1644, %v1654
        %v1661 = vsub.f32 %v1645, %v1657
        %v1662 = vmul.f32 %v1658, 1.442695
        %v1663 = vpow.pop %v1662
        %v1664 = vmul.f32 %v1659, 1.442695
        %v1665 = vpow.pop %v1664
        %v1666 = vmul.f32 %v1660, 1.442695
        %v1667 = vpow.pop %v1666
        %v1668 = vmul.f32 %v1661, 1.442695
        %v1669 = vpow.pop %v1668
        %v1670 = vsel %vm1457, %v1663, 0.0
        %1671 = vadd.xlane.f32.xlu0 %v1670
        %v1672 = vpop.xlane.xlu0 %1671
        %v1673 = vsel %vm1457, %v1665, 0.0
        %1674 = vadd.xlane.f32.xlu0 %v1673
        %v1675 = vpop.xlane.xlu0 %1674
        %v1676 = vsel %vm1457, %v1667, 0.0
        %1677 = vadd.xlane.f32.xlu0 %v1676
        %v1678 = vpop.xlane.xlu0 %1677
        %v1679 = vsel %vm1457, %v1669, 0.0
        %1680 = vadd.xlane.f32.xlu0 %v1679
        %v1681 = vpop.xlane.xlu0 %1680
        %v1682 = vrcp.pop %v1672
        %v1683 = vrcp.pop %v1675
        %v1684 = vrcp.pop %v1678
        %v1685 = vrcp.pop %v1681
        %v1686 = vmul.f32 %v1663, %v1682
        %v1687 = vmul.f32 %v1665, %v1683
        %v1688 = vmul.f32 %v1667, %v1684
        %v1689 = vmul.f32 %v1669, %v1685
        %v1690 = vpack.c.bf16 %v1686, %v1686
        %v1691 = vpack.c.bf16 %v1687, %v1687
        %v1692 = vpack.c.bf16 %v1688, %v1688
        %v1693 = vpack.c.bf16 %v1689, %v1689
        %v1694 = vld [vmem:[#allocation3] sm:$0xf]
        %v1695 = vld [vmem:[#allocation3 + $0x4] sm:$0xf]
        %v1696 = vld [vmem:[#allocation3 + $0x8] sm:$0xf]
        %v1697 = vld [vmem:[#allocation3 + $0xc] sm:$0xf]
        %v1699 = vsel %vm1457, %v1690, 0
        %vm1701 = vcmask 1043456
        %v1703 = vsel %vm1701, %v1694, 0
        %1705 = vmatprep.subr.bf16.mxu0 0
        %1706 = vmatpush1.bf16.msra.mxu0 %v1703
        %1707 = vmatprep.subr.bf16.mxu0 0
        %1708 = vmatpush1.bf16.msra.mxu0 0
        %1709 = vmatprep.subr.bf16.mxu0 0
        %1710 = vmatpush1.bf16.msra.mxu0 0
        %1711 = vmatprep.subr.bf16.mxu0 0
        %1712 = vmatpush1.bf16.msra.mxu0 0
        %1713 = vmatprep.subr.bf16.mxu0 0
        %1714 = vmatpush1.bf16.msra.mxu0 0
        %1715 = vmatprep.subr.bf16.mxu0 0
        %1716 = vmatpush1.bf16.msra.mxu0 0
        %1717 = vmatprep.subr.bf16.mxu0 0
        %1718 = vmatpush1.bf16.msra.mxu0 0
        %1719 = vmatprep.subr.bf16.mxu0 0
        %1720 = vmatpush1.bf16.msra.mxu0 0
        %1721 = vmatprep.subr.bf16.mxu0 0
        %1722 = vmatpush1.bf16.msra.mxu0 0
        %1723 = vmatprep.subr.bf16.mxu0 0
        %1724 = vmatpush1.bf16.msra.mxu0 0
        %1725 = vmatprep.subr.bf16.mxu0 0
        %1726 = vmatpush1.bf16.msra.mxu0 0
        %1727 = vmatprep.subr.bf16.mxu0 0
        %1728 = vmatpush1.bf16.msra.mxu0 0
        %1729 = vmatprep.subr.bf16.mxu0 0
        %1730 = vmatpush1.bf16.msra.mxu0 0
        %1731 = vmatprep.subr.bf16.mxu0 0
        %1732 = vmatpush1.bf16.msra.mxu0 0
        %1733 = vmatprep.subr.bf16.mxu0 0
        %1734 = vmatpush1.bf16.msra.mxu0 0
        %1735 = vmatprep.subr.bf16.mxu0 0
        %1736 = vmatpush1.bf16.msra.mxu0 0
        %1737 = vmatprep.mubr.bf16.mxu0 0
        %1738 = vmatmul.mubr.bf16.gmra.mrb[0].mxu0 %v1699
        %v1739 = vpop.f32.mrb[0].mxu0
        %v1740 = vadd.f32 0.0, %v1739
        %v1741 = vpop.f32.mrb[0].mxu0
        %v1742 = vpop.f32.mrb[0].mxu0
        %v1743 = vpop.f32.mrb[0].mxu0
        %1744 = vdwg.mxu0
        %v1746 = vsel %vm1457, %v1691, 0
        %v1749 = vsel %vm1701, %v1695, 0
        %1751 = vmatprep.subr.bf16.mxu0 0
        %1752 = vmatpush1.bf16.msra.mxu0 %v1749
        %1753 = vmatprep.subr.bf16.mxu0 0
        %1754 = vmatpush1.bf16.msra.mxu0 0
        %1755 = vmatprep.subr.bf16.mxu0 0
        %1756 = vmatpush1.bf16.msra.mxu0 0
        %1757 = vmatprep.subr.bf16.mxu0 0
        %1758 = vmatpush1.bf16.msra.mxu0 0
        %1759 = vmatprep.subr.bf16.mxu0 0
        %1760 = vmatpush1.bf16.msra.mxu0 0
        %1761 = vmatprep.subr.bf16.mxu0 0
        %1762 = vmatpush1.bf16.msra.mxu0 0
        %1763 = vmatprep.subr.bf16.mxu0 0
        %1764 = vmatpush1.bf16.msra.mxu0 0
        %1765 = vmatprep.subr.bf16.mxu0 0
        %1766 = vmatpush1.bf16.msra.mxu0 0
        %1767 = vmatprep.subr.bf16.mxu0 0
        %1768 = vmatpush1.bf16.msra.mxu0 0
        %1769 = vmatprep.subr.bf16.mxu0 0
        %1770 = vmatpush1.bf16.msra.mxu0 0
        %1771 = vmatprep.subr.bf16.mxu0 0
        %1772 = vmatpush1.bf16.msra.mxu0 0
        %1773 = vmatprep.subr.bf16.mxu0 0
        %1774 = vmatpush1.bf16.msra.mxu0 0
        %1775 = vmatprep.subr.bf16.mxu0 0
        %1776 = vmatpush1.bf16.msra.mxu0 0
        %1777 = vmatprep.subr.bf16.mxu0 0
        %1778 = vmatpush1.bf16.msra.mxu0 0
        %1779 = vmatprep.subr.bf16.mxu0 0
        %1780 = vmatpush1.bf16.msra.mxu0 0
        %1781 = vmatprep.subr.bf16.mxu0 0
        %1782 = vmatpush1.bf16.msra.mxu0 0
        %1783 = vmatprep.mubr.bf16.mxu0 0
        %1784 = vmatmul.mubr.bf16.gmra.mrb[0].mxu0 %v1746
        %v1785 = vpop.f32.mrb[0].mxu0
        %v1786 = vadd.f32 0.0, %v1785
        %v1787 = vpop.f32.mrb[0].mxu0
        %v1788 = vpop.f32.mrb[0].mxu0
        %v1789 = vpop.f32.mrb[0].mxu0
        %1790 = vdwg.mxu0
        %v1792 = vsel %vm1457, %v1692, 0
        %v1795 = vsel %vm1701, %v1696, 0
        %1797 = vmatprep.subr.bf16.mxu0 0
        %1798 = vmatpush1.bf16.msra.mxu0 %v1795
        %1799 = vmatprep.subr.bf16.mxu0 0
        %1800 = vmatpush1.bf16.msra.mxu0 0
        %1801 = vmatprep.subr.bf16.mxu0 0
        %1802 = vmatpush1.bf16.msra.mxu0 0
        %1803 = vmatprep.subr.bf16.mxu0 0
        %1804 = vmatpush1.bf16.msra.mxu0 0
        %1805 = vmatprep.subr.bf16.mxu0 0
        %1806 = vmatpush1.bf16.msra.mxu0 0
        %1807 = vmatprep.subr.bf16.mxu0 0
        %1808 = vmatpush1.bf16.msra.mxu0 0
        %1809 = vmatprep.subr.bf16.mxu0 0
        %1810 = vmatpush1.bf16.msra.mxu0 0
        %1811 = vmatprep.subr.bf16.mxu0 0
        %1812 = vmatpush1.bf16.msra.mxu0 0
        %1813 = vmatprep.subr.bf16.mxu0 0
        %1814 = vmatpush1.bf16.msra.mxu0 0
        %1815 = vmatprep.subr.bf16.mxu0 0
        %1816 = vmatpush1.bf16.msra.mxu0 0
        %1817 = vmatprep.subr.bf16.mxu0 0
        %1818 = vmatpush1.bf16.msra.mxu0 0
        %1819 = vmatprep.subr.bf16.mxu0 0
        %1820 = vmatpush1.bf16.msra.mxu0 0
        %1821 = vmatprep.subr.bf16.mxu0 0
        %1822 = vmatpush1.bf16.msra.mxu0 0
        %1823 = vmatprep.subr.bf16.mxu0 0
        %1824 = vmatpush1.bf16.msra.mxu0 0
        %1825 = vmatprep.subr.bf16.mxu0 0
        %1826 = vmatpush1.bf16.msra.mxu0 0
        %1827 = vmatprep.subr.bf16.mxu0 0
        %1828 = vmatpush1.bf16.msra.mxu0 0
        %1829 = vmatprep.mubr.bf16.mxu0 0
        %1830 = vmatmul.mubr.bf16.gmra.mrb[0].mxu0 %v1792
        %v1831 = vpop.f32.mrb[0].mxu0
        %v1832 = vadd.f32 0.0, %v1831
        %v1833 = vpop.f32.mrb[0].mxu0
        %v1834 = vpop.f32.mrb[0].mxu0
        %v1835 = vpop.f32.mrb[0].mxu0
        %1836 = vdwg.mxu0
        %v1838 = vsel %vm1457, %v1693, 0
        %v1841 = vsel %vm1701, %v1697, 0
        %1843 = vmatprep.subr.bf16.mxu0 0
        %1844 = vmatpush1.bf16.msra.mxu0 %v1841
        %1845 = vmatprep.subr.bf16.mxu0 0
        %1846 = vmatpush1.bf16.msra.mxu0 0
        %1847 = vmatprep.subr.bf16.mxu0 0
        %1848 = vmatpush1.bf16.msra.mxu0 0
        %1849 = vmatprep.subr.bf16.mxu0 0
        %1850 = vmatpush1.bf16.msra.mxu0 0
        %1851 = vmatprep.subr.bf16.mxu0 0
        %1852 = vmatpush1.bf16.msra.mxu0 0
        %1853 = vmatprep.subr.bf16.mxu0 0
        %1854 = vmatpush1.bf16.msra.mxu0 0
        %1855 = vmatprep.subr.bf16.mxu0 0
        %1856 = vmatpush1.bf16.msra.mxu0 0
        %1857 = vmatprep.subr.bf16.mxu0 0
        %1858 = vmatpush1.bf16.msra.mxu0 0
        %1859 = vmatprep.subr.bf16.mxu0 0
        %1860 = vmatpush1.bf16.msra.mxu0 0
        %1861 = vmatprep.subr.bf16.mxu0 0
        %1862 = vmatpush1.bf16.msra.mxu0 0
        %1863 = vmatprep.subr.bf16.mxu0 0
        %1864 = vmatpush1.bf16.msra.mxu0 0
        %1865 = vmatprep.subr.bf16.mxu0 0
        %1866 = vmatpush1.bf16.msra.mxu0 0
        %1867 = vmatprep.subr.bf16.mxu0 0
        %1868 = vmatpush1.bf16.msra.mxu0 0
        %1869 = vmatprep.subr.bf16.mxu0 0
        %1870 = vmatpush1.bf16.msra.mxu0 0
        %1871 = vmatprep.subr.bf16.mxu0 0
        %1872 = vmatpush1.bf16.msra.mxu0 0
        %1873 = vmatprep.subr.bf16.mxu0 0
        %1874 = vmatpush1.bf16.msra.mxu0 0
        %1875 = vmatprep.mubr.bf16.mxu0 0
        %1876 = vmatmul.mubr.bf16.gmra.mrb[0].mxu0 %v1838
        %v1877 = vpop.f32.mrb[0].mxu0
        %v1878 = vadd.f32 0.0, %v1877
        %v1879 = vpop.f32.mrb[0].mxu0
        %v1880 = vpop.f32.mrb[0].mxu0
        %v1881 = vpop.f32.mrb[0].mxu0
        %1882 = vdwg.mxu0
        %v1883 = vcombine.low %v1740, %v1832
        %v1884 = vcombine.high %v1740, %v1832
        %v1886 = vunpack.c.l.s4 1983009808
        %v1887 = vunpack.c.0.s8 %v1886
        %v1888 = vlaneseq
        %v1889 = vshrl.u32 %v1888, 7
        %v1890 = vsub.s32 %v1887, %v1889
        %v1891 = vrot.slane %v1883, %v1890
        %v1893 = vunpack.c.l.s4 1983009808
        %v1894 = vunpack.c.0.s8 %v1893
        %v1895 = vlaneseq
        %v1896 = vshrl.u32 %v1895, 7
        %v1897 = vsub.s32 %v1894, %v1896
        %v1898 = vrot.slane %v1884, %v1897
        %v1899 = vcombine.low %v1786, %v1878
        %v1900 = vcombine.high %v1786, %v1878
        %v1902 = vunpack.c.l.s4 1983009808
        %v1903 = vunpack.c.0.s8 %v1902
        %v1904 = vlaneseq
        %v1905 = vshrl.u32 %v1904, 7
        %v1906 = vsub.s32 %v1903, %v1905
        %v1907 = vrot.slane %v1899, %v1906
        %v1909 = vunpack.c.l.s4 1983009808
        %v1910 = vunpack.c.0.s8 %v1909
        %v1911 = vlaneseq
        %v1912 = vshrl.u32 %v1911, 7
        %v1913 = vsub.s32 %v1910, %v1912
        %v1914 = vrot.slane %v1900, %v1913
        %v1915 = vcombine.low %v1891, %v1907
        %v1916 = vcombine.high %v1891, %v1907
        %v1918 = vunpack.c.l.s4 1934713408
        %v1919 = vunpack.c.0.s8 %v1918
        %v1920 = vlaneseq
        %v1921 = vshrl.u32 %v1920, 7
        %v1922 = vsub.s32 %v1919, %v1921
        %v1923 = vrot.slane %v1915, %v1922
        %v1925 = vunpack.c.l.s4 1934713408
        %v1926 = vunpack.c.0.s8 %v1925
        %v1927 = vlaneseq
        %v1928 = vshrl.u32 %v1927, 7
        %v1929 = vsub.s32 %v1926, %v1928
        %v1930 = vrot.slane %v1916, %v1929
        %v1931 = vcombine.low %v1898, %v1914
        %v1932 = vcombine.high %v1898, %v1914
        %v1934 = vunpack.c.l.s4 1934713408
        %v1935 = vunpack.c.0.s8 %v1934
        %v1936 = vlaneseq
        %v1937 = vshrl.u32 %v1936, 7
        %v1938 = vsub.s32 %v1935, %v1937
        %v1939 = vrot.slane %v1931, %v1938
        %v1941 = vunpack.c.l.s4 1934713408
        %v1942 = vunpack.c.0.s8 %v1941
        %v1943 = vlaneseq
        %v1944 = vshrl.u32 %v1943, 7
        %v1945 = vsub.s32 %v1942, %v1944
        %v1946 = vrot.slane %v1932, %v1945
        %v1947 = vcombine.high %v1923, 0.0
        %v1948 = vcombine.high %v1930, 0.0
        %v1949 = vcombine.high %v1939, 0.0
        %v1950 = vcombine.high %v1946, 0.0
        %v1951 = vcombine.low %v1923, %v1930
        %v1953 = vunpack.c.l.s4 1983009808
        %v1954 = vunpack.c.0.s8 %v1953
        %v1955 = vlaneseq
        %v1956 = vshrl.u32 %v1955, 7
        %v1957 = vsub.s32 %v1954, %v1956
        %v1958 = vrot.slane %v1951, %v1957
        %v1959 = vcombine.low %v1947, %v1948
        %v1961 = vunpack.c.l.s4 1983009808
        %v1962 = vunpack.c.0.s8 %v1961
        %v1963 = vlaneseq
        %v1964 = vshrl.u32 %v1963, 7
        %v1965 = vsub.s32 %v1962, %v1964
        %v1966 = vrot.slane %v1959, %v1965
        %v1967 = vcombine.low %v1939, %v1946
        %v1969 = vunpack.c.l.s4 1983009808
        %v1970 = vunpack.c.0.s8 %v1969
        %v1971 = vlaneseq
        %v1972 = vshrl.u32 %v1971, 7
        %v1973 = vsub.s32 %v1970, %v1972
        %v1974 = vrot.slane %v1967, %v1973
        %v1975 = vcombine.low %v1949, %v1950
        %v1977 = vunpack.c.l.s4 1983009808
        %v1978 = vunpack.c.0.s8 %v1977
        %v1979 = vlaneseq
        %v1980 = vshrl.u32 %v1979, 7
        %v1981 = vsub.s32 %v1978, %v1980
        %v1982 = vrot.slane %v1975, %v1981
        %v1983 = vcombine.low %v1958, %v1966
        %v1984 = vcombine.high %v1958, %v1966
        %v1986 = vunpack.c.l.s4 1934713408
        %v1987 = vunpack.c.0.s8 %v1986
        %v1988 = vlaneseq
        %v1989 = vshrl.u32 %v1988, 7
        %v1990 = vsub.s32 %v1987, %v1989
        %v1991 = vrot.slane %v1983, %v1990
        %v1993 = vunpack.c.l.s4 1934713408
        %v1994 = vunpack.c.0.s8 %v1993
        %v1995 = vlaneseq
        %v1996 = vshrl.u32 %v1995, 7
        %v1997 = vsub.s32 %v1994, %v1996
        %v1998 = vrot.slane %v1984, %v1997
        %v1999 = vcombine.low %v1974, %v1982
        %v2000 = vcombine.high %v1974, %v1982
        %v2002 = vunpack.c.l.s4 1934713408
        %v2003 = vunpack.c.0.s8 %v2002
        %v2004 = vlaneseq
        %v2005 = vshrl.u32 %v2004, 7
        %v2006 = vsub.s32 %v2003, %v2005
        %v2007 = vrot.slane %v1999, %v2006
        %v2009 = vunpack.c.l.s4 1934713408
        %v2010 = vunpack.c.0.s8 %v2009
        %v2011 = vlaneseq
        %v2012 = vshrl.u32 %v2011, 7
        %v2013 = vsub.s32 %v2010, %v2012
        %v2014 = vrot.slane %v2000, %v2013
        %v2015 = vcombine.low %v1991, %v2007
        %v2016 = vcombine.high %v1991, %v2007
        %v2017 = vcombine.low %v1998, %v2014
        %v2018 = vcombine.high %v1998, %v2014
        %2020 = vrot.lane.b32.xlu0 %v2016, 8
        %v2021 = vpop.permute.xlu0 %2020
        %2024 = vrot.lane.b32.xlu0 %v2017, 16
        %v2025 = vpop.permute.xlu0 %2024
        %2028 = vrot.lane.b32.xlu0 %v2018, 24
        %v2029 = vpop.permute.xlu0 %2028
        %v2031 = vsel %vm1457, %v2015, %v2021
        %vm2032 = vcmask 130048
        %v2033 = vsel %vm2032, %v2031, %v2025
        %vm2034 = vcmask 195584
        %v2035 = vsel %vm2034, %v2033, %v2029
        %v2036 = vpack.c.bf16 %v2035, %v2035
        %v2037 = vld [vmem:[#allocation16] sm:$0xf]
        %v2038 = vld [vmem:[#allocation16 + $0x4] sm:$0xf]
        %v2039 = vld [vmem:[#allocation16 + $0x8] sm:$0xf]
        %v2040 = vld [vmem:[#allocation16 + $0xc] sm:$0xf]
        %v2041 = vld [vmem:[#allocation18] sm:$0x1]
        %v2043 = vlaneseq
        %v2044 = vshrl.u32 %v2043, 7
        %v2045 = vsub.s32 0, %v2044
        %v2046 = vrot.slane %v2041, %v2045
        %v2052 = vunpack.c.l.b16 %v2037
        %v2053 = vunpack.c.l.b16 %v2038
        %v2054 = vunpack.c.l.b16 %v2039
        %v2055 = vunpack.c.l.b16 %v2040
        %v2056 = vpack.c.b16 %v2053, %v2052
        %v2057 = vpack.c.b16 %v2055, %v2054
        %v2061 = vsel %vm1207, %v2036, 0
        %2063 = vmatprep.subr.bf16.mxu0 0
        %2064 = vmatpush1.bf16.msra.mxu0 %v2056
        %2065 = vmatprep.subr.bf16.mxu0 0
        %2066 = vmatpush1.bf16.msra.mxu0 %v2057
        %2067 = vmatprep.subr.bf16.mxu0 0
        %2068 = vmatpush1.bf16.msra.mxu0 0
        %2069 = vmatprep.subr.bf16.mxu0 0
        %2070 = vmatpush1.bf16.msra.mxu0 0
        %2071 = vmatprep.subr.bf16.mxu0 0
        %2072 = vmatpush1.bf16.msra.mxu0 0
        %2073 = vmatprep.subr.bf16.mxu0 0
        %2074 = vmatpush1.bf16.msra.mxu0 0
        %2075 = vmatprep.subr.bf16.mxu0 0
        %2076 = vmatpush1.bf16.msra.mxu0 0
        %2077 = vmatprep.subr.bf16.mxu0 0
        %2078 = vmatpush1.bf16.msra.mxu0 0
        %2079 = vmatprep.subr.bf16.mxu0 0
        %2080 = vmatpush1.bf16.msra.mxu0 0
        %2081 = vmatprep.subr.bf16.mxu0 0
        %2082 = vmatpush1.bf16.msra.mxu0 0
        %2083 = vmatprep.subr.bf16.mxu0 0
        %2084 = vmatpush1.bf16.msra.mxu0 0
        %2085 = vmatprep.subr.bf16.mxu0 0
        %2086 = vmatpush1.bf16.msra.mxu0 0
        %2087 = vmatprep.subr.bf16.mxu0 0
        %2088 = vmatpush1.bf16.msra.mxu0 0
        %2089 = vmatprep.subr.bf16.mxu0 0
        %2090 = vmatpush1.bf16.msra.mxu0 0
        %2091 = vmatprep.subr.bf16.mxu0 0
        %2092 = vmatpush1.bf16.msra.mxu0 0
        %2093 = vmatprep.subr.bf16.mxu0 0
        %2094 = vmatpush1.bf16.msra.mxu0 0
        %2095 = vmatprep.mubr.bf16.mxu0 0
        %2096 = vmatmul.mubr.bf16.gmra.mrb[0].mxu0 %v2061
        %v2097 = vpop.f32.mrb[0].mxu0
        %v2098 = vadd.f32 %v2046, %v2097
        %v2099 = vpop.f32.mrb[0].mxu0
        %v2100 = vpop.f32.mrb[0].mxu0
        %v2101 = vpop.f32.mrb[0].mxu0
        %2102 = vdwg.mxu0
        %v2103 = vadd.f32 %v1206, %v2098
        %v2104 = vld [vmem:[#allocation7] sm:$0x1]
        %v2105 = vld [vmem:[#allocation9] sm:$0x1]
        %v2106 = vsel %vm1207, %v2103, 0.0
        %2107 = vadd.xlane.f32.xlu0 %v2106
        %v2108 = vpop.xlane.xlu0 %2107
        %v2109 = vmul.f32 %v2108, %v1211
        %v2110 = vsub.f32 %v2103, %v2109
        %v2111 = vmul.f32 %v2110, %v2110
        %v2112 = vsel %vm1207, %v2111, 0.0
        %2113 = vadd.xlane.f32.xlu0 %v2112
        %v2114 = vpop.xlane.xlu0 %2113
        %v2115 = vmul.f32 %v2114, %v1211
        %v2116 = vadd.f32 %v2115, 1e-05
        %v2117 = vrsqrt.pop %v2116
        %v2118 = vmul.f32 %v2110, %v2117
        %v2120 = vlaneseq
        %v2121 = vshrl.u32 %v2120, 7
        %v2122 = vsub.s32 0, %v2121
        %v2123 = vrot.slane %v2104, %v2122
        %v2125 = vmul.f32 %v2118, %v2123
        %v2127 = vlaneseq
        %v2128 = vshrl.u32 %v2127, 7
        %v2129 = vsub.s32 0, %v2128
        %v2130 = vrot.slane %v2105, %v2129
        %v2132 = vadd.f32 %v2125, %v2130
        %v2133 = vpack.c.bf16 %v2132, %v2132
        %v2134 = vld [vmem:[%s14] sm:$0xf]
        %v2135 = vld [vmem:[%s14 + $0x4] sm:$0xf]
        %v2136 = vld [vmem:[%s14 + $0x8] sm:$0xf]
        %v2137 = vld [vmem:[%s14 + $0xc] sm:$0xf]
        %v2138 = vld [vmem:[%s15] sm:$0x1]
        %v2140 = vlaneseq
        %v2141 = vshrl.u32 %v2140, 7
        %v2142 = vsub.s32 0, %v2141
        %v2143 = vrot.slane %v2138, %v2142
        %v2149 = vunpack.c.l.b16 %v2134
        %v2150 = vunpack.c.l.b16 %v2135
        %v2151 = vunpack.c.l.b16 %v2136
        %v2152 = vunpack.c.l.b16 %v2137
        %v2153 = vpack.c.b16 %v2150, %v2149
        %v2154 = vpack.c.b16 %v2152, %v2151
        %v2158 = vsel %vm1207, %v2133, 0
        %2160 = vmatprep.subr.bf16.mxu0 0
        %2161 = vmatpush1.bf16.msra.mxu0 %v2153
        %2162 = vmatprep.subr.bf16.mxu0 0
        %2163 = vmatpush1.bf16.msra.mxu0 %v2154
        %2164 = vmatprep.subr.bf16.mxu0 0
        %2165 = vmatpush1.bf16.msra.mxu0 0
        %2166 = vmatprep.subr.bf16.mxu0 0
        %2167 = vmatpush1.bf16.msra.mxu0 0
        %2168 = vmatprep.subr.bf16.mxu0 0
        %2169 = vmatpush1.bf16.msra.mxu0 0
        %2170 = vmatprep.subr.bf16.mxu0 0
        %2171 = vmatpush1.bf16.msra.mxu0 0
        %2172 = vmatprep.subr.bf16.mxu0 0
        %2173 = vmatpush1.bf16.msra.mxu0 0
        %2174 = vmatprep.subr.bf16.mxu0 0
        %2175 = vmatpush1.bf16.msra.mxu0 0
        %2176 = vmatprep.subr.bf16.mxu0 0
        %2177 = vmatpush1.bf16.msra.mxu0 0
        %2178 = vmatprep.subr.bf16.mxu0 0
        %2179 = vmatpush1.bf16.msra.mxu0 0
        %2180 = vmatprep.subr.bf16.mxu0 0
        %2181 = vmatpush1.bf16.msra.mxu0 0
        %2182 = vmatprep.subr.bf16.mxu0 0
        %2183 = vmatpush1.bf16.msra.mxu0 0
        %2184 = vmatprep.subr.bf16.mxu0 0
        %2185 = vmatpush1.bf16.msra.mxu0 0
        %2186 = vmatprep.subr.bf16.mxu0 0
        %2187 = vmatpush1.bf16.msra.mxu0 0
        %2188 = vmatprep.subr.bf16.mxu0 0
        %2189 = vmatpush1.bf16.msra.mxu0 0
        %2190 = vmatprep.subr.bf16.mxu0 0
        %2191 = vmatpush1.bf16.msra.mxu0 0
        %2192 = vmatprep.mubr.bf16.mxu0 0
        %2193 = vmatmul.mubr.bf16.gmra.mrb[0].mxu0 %v2158
        %v2194 = vpop.f32.mrb[0].mxu0
        %v2195 = vadd.f32 %v2143, %v2194
        %v2196 = vpop.f32.mrb[0].mxu0
        %v2197 = vpop.f32.mrb[0].mxu0
        %v2198 = vpop.f32.mrb[0].mxu0
        %2199 = vdwg.mxu0
        %v2200 = vmul.f32 %v2195, 0.5
        %v2201 = vmul.f32 %v2195, 0.70710677
        %v2202 = verf.f32.pop %v2201
        %v2203 = vadd.f32 %v2202, 1.0
        %v2204 = vmul.f32 %v2200, %v2203
        %v2205 = vpack.c.bf16 %v2204, %v2204
        %v2206 = vld [vmem:[%s16] sm:$0xf]
        %v2207 = vld [vmem:[%s16 + $0x4] sm:$0xf]
        %v2208 = vld [vmem:[%s16 + $0x8] sm:$0xf]
        %v2209 = vld [vmem:[%s16 + $0xc] sm:$0xf]
        %v2210 = vld [vmem:[%s16 + $0x10] sm:$0xf]
        %v2211 = vld [vmem:[%s16 + $0x14] sm:$0xf]
        %v2212 = vld [vmem:[%s16 + $0x18] sm:$0xf]
        %v2213 = vld [vmem:[%s16 + $0x1c] sm:$0xf]
        %v2214 = vld [vmem:[%s17] sm:$0x1]
        %v2216 = vlaneseq
        %v2217 = vshrl.u32 %v2216, 7
        %v2218 = vsub.s32 0, %v2217
        %v2219 = vrot.slane %v2214, %v2218
        %v2229 = vunpack.c.l.b16 %v2206
        %v2230 = vunpack.c.l.b16 %v2207
        %v2231 = vunpack.c.l.b16 %v2208
        %v2232 = vunpack.c.l.b16 %v2209
        %v2233 = vunpack.c.l.b16 %v2210
        %v2234 = vunpack.c.l.b16 %v2211
        %v2235 = vunpack.c.l.b16 %v2212
        %v2236 = vunpack.c.l.b16 %v2213
        %v2237 = vpack.c.b16 %v2230, %v2229
        %v2238 = vpack.c.b16 %v2232, %v2231
        %v2239 = vpack.c.b16 %v2234, %v2233
        %v2240 = vpack.c.b16 %v2236, %v2235
        %vm2245 = vcmask 523264
        %v2247 = vsel %vm2245, %v2205, 0
        %2249 = vmatprep.subr.bf16.mxu0 0
        %2250 = vmatpush1.bf16.msra.mxu0 %v2237
        %2251 = vmatprep.subr.bf16.mxu0 0
        %2252 = vmatpush1.bf16.msra.mxu0 %v2238
        %2253 = vmatprep.subr.bf16.mxu0 0
        %2254 = vmatpush1.bf16.msra.mxu0 %v2239
        %2255 = vmatprep.subr.bf16.mxu0 0
        %2256 = vmatpush1.bf16.msra.mxu0 %v2240
        %2257 = vmatprep.subr.bf16.mxu0 0
        %2258 = vmatpush1.bf16.msra.mxu0 0
        %2259 = vmatprep.subr.bf16.mxu0 0
        %2260 = vmatpush1.bf16.msra.mxu0 0
        %2261 = vmatprep.subr.bf16.mxu0 0
        %2262 = vmatpush1.bf16.msra.mxu0 0
        %2263 = vmatprep.subr.bf16.mxu0 0
        %2264 = vmatpush1.bf16.msra.mxu0 0
        %2265 = vmatprep.subr.bf16.mxu0 0
        %2266 = vmatpush1.bf16.msra.mxu0 0
        %2267 = vmatprep.subr.bf16.mxu0 0
        %2268 = vmatpush1.bf16.msra.mxu0 0
        %2269 = vmatprep.subr.bf16.mxu0 0
        %2270 = vmatpush1.bf16.msra.mxu0 0
        %2271 = vmatprep.subr.bf16.mxu0 0
        %2272 = vmatpush1.bf16.msra.mxu0 0
        %2273 = vmatprep.subr.bf16.mxu0 0
        %2274 = vmatpush1.bf16.msra.mxu0 0
        %2275 = vmatprep.subr.bf16.mxu0 0
        %2276 = vmatpush1.bf16.msra.mxu0 0
        %2277 = vmatprep.subr.bf16.mxu0 0
        %2278 = vmatpush1.bf16.msra.mxu0 0
        %2279 = vmatprep.subr.bf16.mxu0 0
        %2280 = vmatpush1.bf16.msra.mxu0 0
        %2281 = vmatprep.mubr.bf16.mxu0 0
        %2282 = vmatmul.mubr.bf16.gmra.mrb[0].mxu0 %v2247
        %v2283 = vpop.f32.mrb[0].mxu0
        %v2284 = vadd.f32 %v2219, %v2283
        %v2285 = vpop.f32.mrb[0].mxu0
        %v2286 = vpop.f32.mrb[0].mxu0
        %v2287 = vpop.f32.mrb[0].mxu0
        %2288 = vdwg.mxu0
        %v2289 = vadd.f32 %v2103, %v2284
        %2290 = vst.msk [vmem:[%s718] sm:$0xff] %vm1207, %v2289
        %s2291 = sand.u32 %s449, 1
        %s2292 = scalar_lea.sflag [#allocation6], %s2291
        %s2293 = sand.u32 %s449, 1
        %s2294 = smul.addr %s2293, 8
        %s2295 = scalar_lea.vmem [#allocation19], %s2294
        // Predicated region
        $region133: #{tpu_custom_call.1} parent=91 // pred_check
          %p2296 = pneg %p459
        $region134: #{tpu_custom_call.1} parent=91 // pred_check_branch
          %2298 = sbr.rel (%p2296) target = $region136
        $region135: #{tpu_custom_call.1} parent=91 // pred_region
          %s2300 = ssub.s32 128, 128
          %2301 = vsyncadd %s2292, %s2300
          %s2302 = sadd.s32 %s42, %s41
          %s2303 = smul.addr %s2302, 128
          %s2304 = scalar_lea.hbm %s18, %s2303
          %s2306 = sshll.u32 %s2295, 4
          %s2307 = int_to_ptr.vmem [resolvable:$true] %s2306
          %2309 = dma.vmem_to_hbm [thread:$0]  %s2307, 128, %s2304, %s2292
        $region136: #{tpu_custom_call.1} parent=91 // pred_fallthru
          _
      $region92: #{tpu_custom_call.1} parent=5 // pred_fallthru
        _
      %p2310 = scmp.le.s32.totalorder 2, %s32
      // Predicated region
      $region137: #{tpu_custom_call.1} parent=5 // pred_check
        %p2311 = pneg %p2310
      $region138: #{tpu_custom_call.1} parent=5 // pred_check_branch
        %2313 = sbr.rel (%p2311) target = $region140
      $region139: #{tpu_custom_call.1} parent=5 // pred_region
        %s2314 = ssub.s32 %s32, 2
        // Predicated region
        $region141: #{tpu_custom_call.1} parent=139 // pred_check
          %p2315 = pneg %p465
        $region142: #{tpu_custom_call.1} parent=139 // pred_check_branch
          %2317 = sbr.rel (%p2315) target = $region144
        $region143: #{tpu_custom_call.1} parent=139 // pred_region
          %s2318 = sand.u32 %s450, 1
          %s2319 = scalar_lea.sflag [#allocation6], %s2318
          %s2320 = sand.u32 %s450, 1
          %s2321 = smul.addr %s2320, 8
          %s2322 = scalar_lea.vmem [#allocation19], %s2321
          %2323 = dma.done %s2319, 128
        $region144: #{tpu_custom_call.1} parent=139 // pred_fallthru
          _
      $region140: #{tpu_custom_call.1} parent=5 // pred_fallthru
        _
    $region6: #{tpu_custom_call.1} parent=1 // loop_footer
      %s36 = sadd.s32 1, %s32
    $region7: #{tpu_custom_call.1} parent=1 // loop_footer_branch
      %31 = sbr.rel target = $region3
    $region8: #{tpu_custom_call.1} parent=1 // loop_exit
      _
    %2324 = vsyncpa [#allocation5], 1
    %s2325 = scalar_lea.sflag [#allocation5], 1
    %2326 = vsyncpa %s2325, 1
    %2327 = vsyncpa [#allocation8], 1
    %2328 = vsyncpa [#allocation11], 1
    %2329 = vsyncpa [#allocation14], 1
    %2330 = vsyncpa [#allocation17], 1
    %2331 = vsyncpa [#allocation6], 1
    %s2332 = scalar_lea.sflag [#allocation6], 1
    %2333 = vsyncpa %s2332, 1

</llo_original>
